<compile_context>
chip_gen: v6e
topology: v6e:2x2x1
jax: 0.10.0
libtpu: 0.0.40
codegen_flags: <defaults>
</compile_context>

<pallas_src>
import math

import jax
import jax.numpy as jnp
import numpy as np
from jax import lax
from jax.experimental import pallas as pl
from jax.experimental.pallas import tpu as pltpu

_EPAD = 128                  # per-head lane padding for the skew (native lane width)
_NEG_INF = -1000000000.0


# ----------------------- strided-roll capability probe -------------------------

_roll_probe_cache = {}


def _strided_roll_supported(L):
    """Verify on-device that pltpu.roll(shift=1, stride=1) right-rotates row i by i+1."""
    ok = _roll_probe_cache.get(L)
    if ok is not None:
        return ok

    def kern(x_ref, o_ref):
        o_ref[...] = pltpu.roll(x_ref[...], 1, 1, stride=1, stride_axis=0)

    try:
        x_np = np.arange(L * _EPAD, dtype=np.float32).reshape(L, _EPAD)
        got = np.asarray(jax.block_until_ready(
            pl.pallas_call(
                kern,
                out_shape=jax.ShapeDtypeStruct((L, _EPAD), jnp.float32),
            )(jnp.asarray(x_np))))
        want = np.stack([np.roll(x_np[i], i + 1) for i in range(L)])
        ok = bool(np.array_equal(got, want))
    except Exception:
        ok = False
    _roll_probe_cache[L] = ok
    return ok


# ------------------------------- skew helper -----------------------------------

def _skew_padded(slab, L, use_strided):
    """Right-rotate row i of `slab` (L, _EPAD) by (i+1); Srel = first L lanes.

    `slab` holds the qe-masked q_h @ E^T in its last M (== L) lanes and zeros
    elsewhere, which makes the per-row rotate exactly equivalent to the torch
    pad/reshape/slice skew (wrapped lanes land on zeros / unread lanes).
    """
    if use_strided:
        rolled = pltpu.roll(slab, 1, 1, stride=1, stride_axis=0)   # single XLU op
    else:
        # TODO(synk): fallback barrel shifter, only used when the strided XLU
        #             rotate is unavailable on this jax/Mosaic build.
        row = lax.broadcasted_iota(jnp.int32, slab.shape, 0)
        amt = row + 1
        rolled = slab
        b = 1
        while b < _EPAD:
            cand = jnp.roll(rolled, b, axis=1)
            rolled = jnp.where((amt & b) != 0, cand, rolled)
            b <<= 1
    return rolled[:, :L]


# --------------------------- fused attention kernel ----------------------------

def _fused_body(xq_ref, xk_ref, xv_ref, wqkv_ref, bqkv_ref, e_ref, wfc_ref,
                bfc_ref, mask_ref, out_ref, wout_ref, *, h, d, dh, L, scale,
                use_strided):
    w_qkv = wqkv_ref[...]                                   # (3, d, d) bf16
    b_qkv = bqkv_ref[...]                                   # (3, 1, d) f32

    def proj(x_ref, p):
        x = x_ref[0].astype(jnp.bfloat16)                   # (L, d)
        acc = lax.dot_general(x, w_qkv[p], (((1,), (0,)), ((), ())),
                              preferred_element_type=jnp.float32)
        return acc + b_qkv[p]                               # (L, d) f32

    # 1/sqrt(dh) folded into q -> scales both QK^T and Srel (== torch semantics).
    q = proj(xq_ref, 0) * scale
    k = proj(xk_ref, 1)
    v = proj(xv_ref, 2)
    q_bf = q.astype(jnp.bfloat16)
    k_bf = k.astype(jnp.bfloat16)
    v_bf = v.astype(jnp.bfloat16)

    # q @ E^T for every head with ONE MXU push: e_ref is block-diagonal
    # (d, h*_EPAD); head hh's E^T occupies the last L lanes of its 128-wide slab.
    qe = lax.dot_general(q_bf, e_ref[...], (((1,), (0,)), ((), ())),
                         preferred_element_type=jnp.float32)     # (L, h*_EPAD) f32
    row = lax.broadcasted_iota(jnp.int32, qe.shape, 0)
    col = lax.broadcasted_iota(jnp.int32, qe.shape, 1)
    qe = jnp.where((col & (_EPAD - 1)) >= (_EPAD - 1) - row, qe, 0.0)  # _qe_masking

    bias = None
    if mask_ref is not None:                                 # compile-time branch
        bias = mask_ref[...].astype(jnp.float32) * _NEG_INF

    att_heads = []
    wgt_heads = []
    for hh in range(h):                                      # static unrolled heads
        srel = _skew_padded(qe[:, hh * _EPAD:(hh + 1) * _EPAD], L, use_strided)
        q_h = q_bf[:, hh * dh:(hh + 1) * dh]
        k_h = k_bf[:, hh * dh:(hh + 1) * dh]
        v_h = v_bf[:, hh * dh:(hh + 1) * dh]
        logits = lax.dot_general(q_h, k_h, (((1,), (1,)), ((), ())),
                                 preferred_element_type=jnp.float32) + srel
        if bias is not None:
            logits = logits + bias
        mx = jnp.max(logits, axis=-1, keepdims=True)
        p = jnp.exp(logits - mx)
        wgt = p * pl.reciprocal(jnp.sum(p, axis=-1, keepdims=True), approx=True)
        wgt_heads.append(wgt)
        att_heads.append(
            lax.dot_general(wgt.astype(jnp.bfloat16), v_h, (((1,), (0,)), ((), ())),
                            preferred_element_type=jnp.float32))

    # lane-dense epilogue: one (L, d) tile -> fused fc -> single store.
    att = jnp.concatenate(att_heads, axis=1).astype(jnp.bfloat16)   # (L, d)
    out = lax.dot_general(att, wfc_ref[...], (((1,), (0,)), ((), ())),
                          preferred_element_type=jnp.float32) + bfc_ref[...]
    out_ref[0] = out.astype(out_ref.dtype)
    if wout_ref is not None:
        wout_ref[0] = jnp.stack(wgt_heads, axis=0).astype(wout_ref.dtype)


def _make_kernel(*, h, d, dh, L, scale, has_mask, want_weights, use_strided):
    def kernel(*refs):
        (xq_ref, xk_ref, xv_ref, wqkv_ref, bqkv_ref,
         e_ref, wfc_ref, bfc_ref) = refs[:8]
        pos = 8
        mask_ref = None
        if has_mask:
            mask_ref = refs[pos]
            pos += 1
        out_ref = refs[pos]
        wout_ref = refs[pos + 1] if want_weights else None
        _fused_body(xq_ref, xk_ref, xv_ref, wqkv_ref, bqkv_ref, e_ref,
                    wfc_ref, bfc_ref, mask_ref, out_ref, wout_ref,
                    h=h, d=d, dh=dh, L=L, scale=scale, use_strided=use_strided)
    return kernel


# --------------------------------- module glue ---------------------------------

class RelativeGlobalAttentionPallas:
    """JAX/Pallas port of RelativeGlobalAttention (forward, self-attention path)."""

    def __init__(self, h=4, d=32, add_emb=False, max_seq=32, key=None):
        assert d % h == 0
        self.h, self.d, self.dh, self.max_seq = h, d, d // h, max_seq
        self.additional = add_emb
        if key is None:
            key = jax.random.PRNGKey(0)
        ks = jax.random.split(key, 9)
        s = 1.0 / math.sqrt(d)
        init_w = lambda k: jax.random.uniform(k, (d, d), jnp.float32, -s, s)  # (in,out)
        init_b = lambda k: jax.random.uniform(k, (1, d), jnp.float32, -s, s)
        self.wq, self.bq = init_w(ks[0]), init_b(ks[1])
        self.wk, self.bk = init_w(ks[2]), init_b(ks[3])
        self.wv, self.bv = init_w(ks[4]), init_b(ks[5])
        self.wfc, self.bfc = init_w(ks[6]), init_b(ks[7])
        self.E = jax.random.normal(ks[8], (max_seq, self.dh), jnp.float32)
        # packed bf16 MXU operands (the f32 masters above feed the reference)
        self.w_qkv = jnp.stack([self.wq, self.wk, self.wv]).astype(jnp.bfloat16)  # (3,d,d)
        self.b_qkv = jnp.stack([self.bq, self.bk, self.bv])                       # (3,1,d) f32
        self.wfc_bf16 = self.wfc.astype(jnp.bfloat16)
        self._e_blk_cache = {}
        self._call_cache = {}

    # block-diagonal, 128-lane-padded E^T (one per sequence length, cached)
    def _get_e_blk(self, L):
        blk = self._e_blk_cache.get(L)
        if blk is None:
            start = max(0, self.max_seq - L)                 # _get_left_embedding
            et = self.E[start:, :].T                         # (dh, M) f32, M == L
            M = et.shape[1]
            full = jnp.zeros((self.d, self.h * _EPAD), jnp.float32)
            for hh in range(self.h):
                full = full.at[hh * self.dh:(hh + 1) * self.dh,
                               hh * _EPAD + _EPAD - M:(hh + 1) * _EPAD].set(et)
            blk = full.astype(jnp.bfloat16)
            self._e_blk_cache[L] = blk
        return blk

    def _get_call(self, B, L, has_mask, want_weights):
        cache_key = (B, L, has_mask, want_weights)
        fn = self._call_cache.get(cache_key)
        if fn is not None:
            return fn
        h, d = self.h, self.d
        kern = _make_kernel(h=h, d=d, dh=self.dh, L=L,
                            scale=1.0 / math.sqrt(self.dh),
                            has_mask=has_mask, want_weights=want_weights,
                            use_strided=_strided_roll_supported(L))
        in_specs = [
            pl.BlockSpec((1, L, d), lambda b: (b, 0, 0)),        # query
            pl.BlockSpec((1, L, d), lambda b: (b, 0, 0)),        # key
            pl.BlockSpec((1, L, d), lambda b: (b, 0, 0)),        # value
            pl.BlockSpec((3, d, d), lambda b: (0, 0, 0)),        # Wq|Wk|Wv (bf16)
            pl.BlockSpec((3, 1, d), lambda b: (0, 0, 0)),        # biases (f32)
            pl.BlockSpec((d, h * _EPAD), lambda b: (0, 0)),      # block-diag E^T (bf16)
            pl.BlockSpec((d, d), lambda b: (0, 0)),              # Wfc (bf16)
            pl.BlockSpec((1, d), lambda b: (0, 0)),              # bfc (f32)
        ]
        if has_mask:
            in_specs.append(pl.BlockSpec((L, L), lambda b: (0, 0)))
        out_shape = [jax.ShapeDtypeStruct((B, L, d), jnp.float32)]
        out_specs = [pl.BlockSpec((1, L, d), lambda b: (b, 0, 0))]
        if want_weights:
            out_shape.append(jax.ShapeDtypeStruct((B, h, L, L), jnp.float32))
            out_specs.append(pl.BlockSpec((1, h, L, L), lambda b: (b, 0, 0, 0)))
        fn = pl.pallas_call(
            kern,
            out_shape=tuple(out_shape),
            grid=(B,),
            in_specs=in_specs,
            out_specs=tuple(out_specs),
            compiler_params=pltpu.CompilerParams(
                dimension_semantics=("parallel",),
                vmem_limit_bytes=32 * 1024 * 1024),
        )
        self._call_cache[cache_key] = fn
        return fn

    def __call__(self, query, key, value, attn_mask=None, return_weights=True):
        B, L, d = query.shape
        assert d == self.d
        assert query.shape == key.shape == value.shape, "fused path needs Lq==Lk==Lv"
        assert L <= self.max_seq and L <= _EPAD
        # TODO(synk): cross-attention (len_q != len_k) incl. torch's len_k>len_q
        #             F.pad quirk, incremental_state decode-cache bookkeeping and
        #             L > 128 (flash-style Lk tiling, (B,h) grid for v7x VMEM) are
        #             not implemented; forward self-attention semantics only.
        args = [query, key, value, self.w_qkv, self.b_qkv,
                self._get_e_blk(L), self.wfc_bf16, self.bfc]
        if attn_mask is not None:
            args.append(attn_mask.astype(jnp.float32))       # raw mask; *-1e9 in-kernel
        fn = self._get_call(B, L, attn_mask is not None, return_weights)
        outs = fn(*args)
        if return_weights:
            out, weights = outs
            return out, weights
        (out,) = outs
        return out, None


# ----------------------------- pure-JAX reference -------------------------------

def reference_forward(mod, query, key, value, attn_mask=None):
    h, d, dh = mod.h, mod.d, mod.dh
    hi = lax.Precision.HIGHEST
    B, len_q, _ = query.shape
    len_k = key.shape[1]

    def lin(x, w, b):
        return jnp.matmul(x, w, precision=hi) + b[0]

    q = lin(query, mod.wq, mod.bq).reshape(B, len_q, h, dh).transpose(0, 2, 1, 3)
    k = lin(key, mod.wk, mod.bk).reshape(B, len_k, h, dh).transpose(0, 2, 1, 3)
    v = lin(value, mod.wv, mod.bv).reshape(B, len_k, h, dh).transpose(0, 2, 1, 3)

    E = mod.E[max(0, mod.max_seq - len_q):, :]
    QE = jnp.einsum('bhld,md->bhlm', q, E, precision=hi)
    M = QE.shape[-1]
    lengths = jnp.arange(M - 1, M - len_q - 1, -1)
    seq_mask = jnp.arange(M)[None, :] < lengths[:, None]
    QE = jnp.where(seq_mask, 0.0, QE)

    padded = jnp.pad(QE, ((0, 0), (0, 0), (0, 0), (1, 0)))
    Srel = padded.reshape(B, h, M + 1, len_q)[:, :, 1:, :]
    if len_k < len_q:
        Srel = Srel[:, :, :, :len_k]

    logits = (jnp.einsum('bhld,bhmd->bhlm', q, k, precision=hi) + Srel) / math.sqrt(dh)
    if attn_mask is not None:
        logits = logits + attn_mask[None].astype(jnp.float32) * _NEG_INF
    w = jax.nn.softmax(logits, axis=-1)
    att = jnp.einsum('bhlm,bhmd->bhld', w, v, precision=hi)
    out = att.transpose(0, 2, 1, 3).reshape(B, len_q, d)
    out = lin(out, mod.wfc, mod.bfc)
    return out, w


# ------------------------------------ main --------------------------------------

if __name__ == "__main__":
    B, D, H, MAX_SEQ = 2, 32, 4, 32
    root = jax.random.PRNGKey(0)
    kp, kdata = jax.random.split(root)
    mod = RelativeGlobalAttentionPallas(h=H, d=D, max_seq=MAX_SEQ, key=kp)

    for L in (8, 32):
        kq, kk, kv = jax.random.split(jax.random.fold_in(kdata, L), 3)
        query = jax.random.normal(kq, (B, L, D), jnp.float32)
        key = jax.random.normal(kk, (B, L, D), jnp.float32)
        value = jax.random.normal(kv, (B, L, D), jnp.float32)
        causal = (jnp.arange(L)[None, :] > jnp.arange(L)[:, None]).astype(jnp.float32)
        masks = (None, causal) if L == 8 else (None,)

        for mask in masks:
            out, weights = mod(query, key, value, attn_mask=mask)
            out = jax.block_until_ready(out)
            weights = jax.block_until_ready(weights)

            ref_out, ref_w = reference_forward(mod, query, key, value, mask)
            assert out.shape == (B, L, D) and weights.shape == (B, H, L, L)
            err_o = float(np.max(np.abs(np.asarray(out) - np.asarray(ref_out))))
            err_w = float(np.max(np.abs(np.asarray(weights) - np.asarray(ref_w))))
            assert np.allclose(np.asarray(out), np.asarray(ref_out),
                               atol=2e-2, rtol=2e-2), ("out max abs err: %g" % err_o)
            assert np.allclose(np.asarray(weights), np.asarray(ref_w),
                               atol=2e-2, rtol=2e-2), ("weights max abs err: %g" % err_w)

            if mask is None and L == 8:
                # weights-free fast path (skips the (B,h,L,L) writeback entirely)
                out_nw, w_none = mod(query, key, value, attn_mask=None,
                                     return_weights=False)
                out_nw = jax.block_until_ready(out_nw)
                assert w_none is None
                assert np.allclose(np.asarray(out_nw), np.asarray(ref_out),
                                   atol=2e-2, rtol=2e-2)

    print("KERNEL_OK")
</pallas_src>

<mosaic_0001>
module attributes {stable_mosaic.version = 11 : i64} {
  func.func @kern(%arg0: memref<8x128xf32, #tpu.memory_space<vmem>>, %arg1: memref<8x128xf32, #tpu.memory_space<vmem>>) attributes {dimension_semantics = [], scalar_prefetch = 0 : i64, scratch_operands = 0 : i64, tpu.core_type = #tpu.core_type<tc>} {
    %c0 = arith.constant 0 : index
    %c0_0 = arith.constant 0 : index
    %0 = vector.load %arg0[%c0, %c0_0] : memref<8x128xf32, #tpu.memory_space<vmem>>, vector<8x128xf32>
    %c1_i32 = arith.constant 1 : i32
    %1 = tpu.dynamic_rotate %0 by %c1_i32 dim 1 {stride = 1 : si32, stride_dimension = 0 : si32} : vector<8x128xf32>, i32 -> vector<8x128xf32>
    %c0_1 = arith.constant 0 : index
    %c0_2 = arith.constant 0 : index
    %2 = vector.load %arg1[%c0_1, %c0_2] : memref<8x128xf32, #tpu.memory_space<vmem>>, vector<8x128xf32>
    tpu.vector_store %arg1[%c0_1, %c0_2], %1 {strides = array<i32>} : memref<8x128xf32, #tpu.memory_space<vmem>>, vector<8x128xf32>,
    return
  }
}

module attributes {stable_mosaic.version = 11 : i64} {
  func.func @kernel(%arg0: i32, %arg1: memref<1x8x32xf32, #tpu.memory_space<vmem>>, %arg2: memref<1x8x32xf32, #tpu.memory_space<vmem>>, %arg3: memref<1x8x32xf32, #tpu.memory_space<vmem>>, %arg4: memref<3x32x32xbf16, #tpu.memory_space<vmem>>, %arg5: memref<3x1x32xf32, #tpu.memory_space<vmem>>, %arg6: memref<32x512xbf16, #tpu.memory_space<vmem>>, %arg7: memref<32x32xbf16, #tpu.memory_space<vmem>>, %arg8: memref<1x32xf32, #tpu.memory_space<vmem>>, %arg9: memref<1x8x32xf32, #tpu.memory_space<vmem>>, %arg10: memref<1x4x8x8xf32, #tpu.memory_space<vmem>>) attributes {dimension_semantics = [#tpu.dimension_semantics<parallel>], iteration_bounds = array<i64: 2>, scalar_prefetch = 0 : i64, scratch_operands = 0 : i64, tpu.core_type = #tpu.core_type<tc>, window_params = [{transform_indices = @transform_0, window_bounds = array<i64: 1, 8, 32>}, {transform_indices = @transform_1, window_bounds = array<i64: 1, 8, 32>}, {transform_indices = @transform_2, window_bounds = array<i64: 1, 8, 32>}, {pipeline_mode = #tpu.pipeline_mode<synchronous>, transform_indices = @transform_3, window_bounds = array<i64: 3, 32, 32>}, {pipeline_mode = #tpu.pipeline_mode<synchronous>, transform_indices = @transform_4, window_bounds = array<i64: 3, 1, 32>}, {pipeline_mode = #tpu.pipeline_mode<synchronous>, transform_indices = @transform_5, window_bounds = array<i64: 32, 512>}, {pipeline_mode = #tpu.pipeline_mode<synchronous>, transform_indices = @transform_6, window_bounds = array<i64: 32, 32>}, {pipeline_mode = #tpu.pipeline_mode<synchronous>, transform_indices = @transform_7, window_bounds = array<i64: 1, 32>}, {transform_indices = @transform_8, window_bounds = array<i64: 1, 8, 32>}, {transform_indices = @transform_9, window_bounds = array<i64: 1, 4, 8, 8>}]} {
    %c0 = arith.constant 0 : index
    %c0_0 = arith.constant 0 : index
    %c0_1 = arith.constant 0 : index
    %0 = vector.load %arg4[%c0, %c0_0, %c0_1] : memref<3x32x32xbf16, #tpu.memory_space<vmem>>, vector<3x32x32xbf16>
    %c0_2 = arith.constant 0 : index
    %c0_3 = arith.constant 0 : index
    %c0_4 = arith.constant 0 : index
    %1 = vector.load %arg5[%c0_2, %c0_3, %c0_4] : memref<3x1x32xf32, #tpu.memory_space<vmem>>, vector<3x1x32xf32>
    %c0_5 = arith.constant 0 : index
    %c0_6 = arith.constant 0 : index
    %c0_7 = arith.constant 0 : index
    %2 = vector.load %arg1[%c0_5, %c0_6, %c0_7] : memref<1x8x32xf32, #tpu.memory_space<vmem>>, vector<1x8x32xf32>
    %3 = vector.shape_cast %2 : vector<1x8x32xf32> to vector<8x32xf32>
    %4 = arith.truncf %3 : vector<8x32xf32> to vector<8x32xbf16>
    %5 = vector.extract_strided_slice %0 {offsets = [0, 0, 0], sizes = [1, 32, 32], strides = [1, 1, 1]} : vector<3x32x32xbf16> to vector<1x32x32xbf16>
    %6 = vector.shape_cast %5 : vector<1x32x32xbf16> to vector<32x32xbf16>
    %cst = arith.constant dense<0.000000e+00> : vector<8x32xf32>
    %7 = tpu.matmul %4, %6, %cst {dimension_numbers = #tpu.dot_dimension_numbers<[1], [0], [0], [1], [0, 0, 1, 1], [], []>} : vector<8x32xbf16>, vector<32x32xbf16>, vector<8x32xf32> -> vector<8x32xf32>
    %8 = vector.extract_strided_slice %1 {offsets = [0, 0, 0], sizes = [1, 1, 32], strides = [1, 1, 1]} : vector<3x1x32xf32> to vector<1x1x32xf32>
    %9 = vector.shape_cast %8 : vector<1x1x32xf32> to vector<1x32xf32>
    %10 = vector.broadcast %9 : vector<1x32xf32> to vector<8x32xf32>
    %11 = arith.addf %7, %10 : vector<8x32xf32>
    %cst_8 = arith.constant 0.353553385 : f32
    %12 = vector.broadcast %cst_8 : f32 to vector<8x32xf32>
    %13 = arith.mulf %11, %12 : vector<8x32xf32>
    %c0_9 = arith.constant 0 : index
    %c0_10 = arith.constant 0 : index
    %c0_11 = arith.constant 0 : index
    %14 = vector.load %arg2[%c0_9, %c0_10, %c0_11] : memref<1x8x32xf32, #tpu.memory_space<vmem>>, vector<1x8x32xf32>
    %15 = vector.shape_cast %14 : vector<1x8x32xf32> to vector<8x32xf32>
    %16 = arith.truncf %15 : vector<8x32xf32> to vector<8x32xbf16>
    %17 = vector.extract_strided_slice %0 {offsets = [1, 0, 0], sizes = [1, 32, 32], strides = [1, 1, 1]} : vector<3x32x32xbf16> to vector<1x32x32xbf16>
    %18 = vector.shape_cast %17 : vector<1x32x32xbf16> to vector<32x32xbf16>
    %cst_12 = arith.constant dense<0.000000e+00> : vector<8x32xf32>
    %19 = tpu.matmul %16, %18, %cst_12 {dimension_numbers = #tpu.dot_dimension_numbers<[1], [0], [0], [1], [0, 0, 1, 1], [], []>} : vector<8x32xbf16>, vector<32x32xbf16>, vector<8x32xf32> -> vector<8x32xf32>
    %20 = vector.extract_strided_slice %1 {offsets = [1, 0, 0], sizes = [1, 1, 32], strides = [1, 1, 1]} : vector<3x1x32xf32> to vector<1x1x32xf32>
    %21 = vector.shape_cast %20 : vector<1x1x32xf32> to vector<1x32xf32>
    %22 = vector.broadcast %21 : vector<1x32xf32> to vector<8x32xf32>
    %23 = arith.addf %19, %22 : vector<8x32xf32>
    %c0_13 = arith.constant 0 : index
    %c0_14 = arith.constant 0 : index
    %c0_15 = arith.constant 0 : index
    %24 = vector.load %arg3[%c0_13, %c0_14, %c0_15] : memref<1x8x32xf32, #tpu.memory_space<vmem>>, vector<1x8x32xf32>
    %25 = vector.shape_cast %24 : vector<1x8x32xf32> to vector<8x32xf32>
    %26 = arith.truncf %25 : vector<8x32xf32> to vector<8x32xbf16>
    %27 = vector.extract_strided_slice %0 {offsets = [2, 0, 0], sizes = [1, 32, 32], strides = [1, 1, 1]} : vector<3x32x32xbf16> to vector<1x32x32xbf16>
    %28 = vector.shape_cast %27 : vector<1x32x32xbf16> to vector<32x32xbf16>
    %cst_16 = arith.constant dense<0.000000e+00> : vector<8x32xf32>
    %29 = tpu.matmul %26, %28, %cst_16 {dimension_numbers = #tpu.dot_dimension_numbers<[1], [0], [0], [1], [0, 0, 1, 1], [], []>} : vector<8x32xbf16>, vector<32x32xbf16>, vector<8x32xf32> -> vector<8x32xf32>
    %30 = vector.extract_strided_slice %1 {offsets = [2, 0, 0], sizes = [1, 1, 32], strides = [1, 1, 1]} : vector<3x1x32xf32> to vector<1x1x32xf32>
    %31 = vector.shape_cast %30 : vector<1x1x32xf32> to vector<1x32xf32>
    %32 = vector.broadcast %31 : vector<1x32xf32> to vector<8x32xf32>
    %33 = arith.addf %29, %32 : vector<8x32xf32>
    %34 = arith.truncf %13 : vector<8x32xf32> to vector<8x32xbf16>
    %35 = arith.truncf %23 : vector<8x32xf32> to vector<8x32xbf16>
    %36 = arith.truncf %33 : vector<8x32xf32> to vector<8x32xbf16>
    %c0_17 = arith.constant 0 : index
    %c0_18 = arith.constant 0 : index
    %37 = vector.load %arg6[%c0_17, %c0_18] : memref<32x512xbf16, #tpu.memory_space<vmem>>, vector<32x512xbf16>
    %cst_19 = arith.constant dense<0.000000e+00> : vector<8x512xf32>
    %38 = tpu.matmul %34, %37, %cst_19 {dimension_numbers = #tpu.dot_dimension_numbers<[1], [0], [0], [1], [0, 0, 1, 1], [], []>} : vector<8x32xbf16>, vector<32x512xbf16>, vector<8x512xf32> -> vector<8x512xf32>
    %39 = tpu.iota {dimensions = array<i32: 0>} : vector<8x512xi32>
    %40 = tpu.iota {dimensions = array<i32: 1>} : vector<8x512xi32>
    %c127_i32 = arith.constant 127 : i32
    %41 = vector.broadcast %c127_i32 : i32 to vector<8x512xi32>
    %42 = arith.andi %40, %41 : vector<8x512xi32>
    %c127_i32_20 = arith.constant 127 : i32
    %43 = vector.broadcast %c127_i32_20 : i32 to vector<8x512xi32>
    %44 = arith.subi %43, %39 : vector<8x512xi32>
    %45 = arith.cmpi sge, %42, %44 : vector<8x512xi32>
    %cst_21 = arith.constant 0.000000e+00 : f32
    %46 = vector.broadcast %cst_21 : f32 to vector<8x512xf32>
    %47 = arith.select %45, %38, %46 : vector<8x512xi1>, vector<8x512xf32>
    %48 = vector.extract_strided_slice %47 {offsets = [0, 0], sizes = [8, 128], strides = [1, 1]} : vector<8x512xf32> to vector<8x128xf32>
    %49 = tpu.iota {dimensions = array<i32: 0>} : vector<8x128xi32>
    %c1_i32 = arith.constant 1 : i32
    %50 = vector.broadcast %c1_i32 : i32 to vector<8x128xi32>
    %51 = arith.addi %49, %50 : vector<8x128xi32>
    %52 = vector.extract_strided_slice %48 {offsets = [0, 127], sizes = [8, 1], strides = [1, 1]} : vector<8x128xf32> to vector<8x1xf32>
    %53 = vector.extract_strided_slice %48 {offsets = [0, 0], sizes = [8, 127], strides = [1, 1]} : vector<8x128xf32> to vector<8x127xf32>
    %54 = tpu.concatenate %52, %53 in 1 : vector<8x1xf32>, vector<8x127xf32> -> vector<8x128xf32>
    %c1_i32_22 = arith.constant 1 : i32
    %55 = vector.broadcast %c1_i32_22 : i32 to vector<8x128xi32>
    %56 = arith.andi %51, %55 : vector<8x128xi32>
    %c0_i32 = arith.constant 0 : i32
    %57 = vector.broadcast %c0_i32 : i32 to vector<8x128xi32>
    %58 = arith.cmpi ne, %56, %57 : vector<8x128xi32>
    %59 = arith.select %58, %54, %48 : vector<8x128xi1>, vector<8x128xf32>
    %60 = vector.extract_strided_slice %59 {offsets = [0, 126], sizes = [8, 2], strides = [1, 1]} : vector<8x128xf32> to vector<8x2xf32>
    %61 = vector.extract_strided_slice %59 {offsets = [0, 0], sizes = [8, 126], strides = [1, 1]} : vector<8x128xf32> to vector<8x126xf32>
    %62 = tpu.concatenate %60, %61 in 1 : vector<8x2xf32>, vector<8x126xf32> -> vector<8x128xf32>
    %c2_i32 = arith.constant 2 : i32
    %63 = vector.broadcast %c2_i32 : i32 to vector<8x128xi32>
    %64 = arith.andi %51, %63 : vector<8x128xi32>
    %c0_i32_23 = arith.constant 0 : i32
    %65 = vector.broadcast %c0_i32_23 : i32 to vector<8x128xi32>
    %66 = arith.cmpi ne, %64, %65 : vector<8x128xi32>
    %67 = arith.select %66, %62, %59 : vector<8x128xi1>, vector<8x128xf32>
    %68 = vector.extract_strided_slice %67 {offsets = [0, 124], sizes = [8, 4], strides = [1, 1]} : vector<8x128xf32> to vector<8x4xf32>
    %69 = vector.extract_strided_slice %67 {offsets = [0, 0], sizes = [8, 124], strides = [1, 1]} : vector<8x128xf32> to vector<8x124xf32>
    %70 = tpu.concatenate %68, %69 in 1 : vector<8x4xf32>, vector<8x124xf32> -> vector<8x128xf32>
    %c4_i32 = arith.constant 4 : i32
    %71 = vector.broadcast %c4_i32 : i32 to vector<8x128xi32>
    %72 = arith.andi %51, %71 : vector<8x128xi32>
    %c0_i32_24 = arith.constant 0 : i32
    %73 = vector.broadcast %c0_i32_24 : i32 to vector<8x128xi32>
    %74 = arith.cmpi ne, %72, %73 : vector<8x128xi32>
    %75 = arith.select %74, %70, %67 : vector<8x128xi1>, vector<8x128xf32>
    %76 = vector.extract_strided_slice %75 {offsets = [0, 120], sizes = [8, 8], strides = [1, 1]} : vector<8x128xf32> to vector<8x8xf32>
    %77 = vector.extract_strided_slice %75 {offsets = [0, 0], sizes = [8, 120], strides = [1, 1]} : vector<8x128xf32> to vector<8x120xf32>
    %78 = tpu.concatenate %76, %77 in 1 : vector<8x8xf32>, vector<8x120xf32> -> vector<8x128xf32>
    %c8_i32 = arith.constant 8 : i32
    %79 = vector.broadcast %c8_i32 : i32 to vector<8x128xi32>
    %80 = arith.andi %51, %79 : vector<8x128xi32>
    %c0_i32_25 = arith.constant 0 : i32
    %81 = vector.broadcast %c0_i32_25 : i32 to vector<8x128xi32>
    %82 = arith.cmpi ne, %80, %81 : vector<8x128xi32>
    %83 = arith.select %82, %78, %75 : vector<8x128xi1>, vector<8x128xf32>
    %84 = vector.extract_strided_slice %83 {offsets = [0, 112], sizes = [8, 16], strides = [1, 1]} : vector<8x128xf32> to vector<8x16xf32>
    %85 = vector.extract_strided_slice %83 {offsets = [0, 0], sizes = [8, 112], strides = [1, 1]} : vector<8x128xf32> to vector<8x112xf32>
    %86 = tpu.concatenate %84, %85 in 1 : vector<8x16xf32>, vector<8x112xf32> -> vector<8x128xf32>
    %c16_i32 = arith.constant 16 : i32
    %87 = vector.broadcast %c16_i32 : i32 to vector<8x128xi32>
    %88 = arith.andi %51, %87 : vector<8x128xi32>
    %c0_i32_26 = arith.constant 0 : i32
    %89 = vector.broadcast %c0_i32_26 : i32 to vector<8x128xi32>
    %90 = arith.cmpi ne, %88, %89 : vector<8x128xi32>
    %91 = arith.select %90, %86, %83 : vector<8x128xi1>, vector<8x128xf32>
    %92 = vector.extract_strided_slice %91 {offsets = [0, 96], sizes = [8, 32], strides = [1, 1]} : vector<8x128xf32> to vector<8x32xf32>
    %93 = vector.extract_strided_slice %91 {offsets = [0, 0], sizes = [8, 96], strides = [1, 1]} : vector<8x128xf32> to vector<8x96xf32>
    %94 = tpu.concatenate %92, %93 in 1 : vector<8x32xf32>, vector<8x96xf32> -> vector<8x128xf32>
    %c32_i32 = arith.constant 32 : i32
    %95 = vector.broadcast %c32_i32 : i32 to vector<8x128xi32>
    %96 = arith.andi %51, %95 : vector<8x128xi32>
    %c0_i32_27 = arith.constant 0 : i32
    %97 = vector.broadcast %c0_i32_27 : i32 to vector<8x128xi32>
    %98 = arith.cmpi ne, %96, %97 : vector<8x128xi32>
    %99 = arith.select %98, %94, %91 : vector<8x128xi1>, vector<8x128xf32>
    %100 = vector.extract_strided_slice %99 {offsets = [0, 64], sizes = [8, 64], strides = [1, 1]} : vector<8x128xf32> to vector<8x64xf32>
    %101 = vector.extract_strided_slice %99 {offsets = [0, 0], sizes = [8, 64], strides = [1, 1]} : vector<8x128xf32> to vector<8x64xf32>
    %102 = tpu.concatenate %100, %101 in 1 : vector<8x64xf32>, vector<8x64xf32> -> vector<8x128xf32>
    %c64_i32 = arith.constant 64 : i32
    %103 = vector.broadcast %c64_i32 : i32 to vector<8x128xi32>
    %104 = arith.andi %51, %103 : vector<8x128xi32>
    %c0_i32_28 = arith.constant 0 : i32
    %105 = vector.broadcast %c0_i32_28 : i32 to vector<8x128xi32>
    %106 = arith.cmpi ne, %104, %105 : vector<8x128xi32>
    %107 = arith.select %106, %102, %99 : vector<8x128xi1>, vector<8x128xf32>
    %108 = vector.extract_strided_slice %107 {offsets = [0, 0], sizes = [8, 8], strides = [1, 1]} : vector<8x128xf32> to vector<8x8xf32>
    %109 = vector.extract_strided_slice %34 {offsets = [0, 0], sizes = [8, 8], strides = [1, 1]} : vector<8x32xbf16> to vector<8x8xbf16>
    %110 = vector.extract_strided_slice %35 {offsets = [0, 0], sizes = [8, 8], strides = [1, 1]} : vector<8x32xbf16> to vector<8x8xbf16>
    %111 = vector.extract_strided_slice %36 {offsets = [0, 0], sizes = [8, 8], strides = [1, 1]} : vector<8x32xbf16> to vector<8x8xbf16>
    %cst_29 = arith.constant dense<0.000000e+00> : vector<8x8xf32>
    %112 = tpu.matmul %109, %110, %cst_29 {dimension_numbers = #tpu.dot_dimension_numbers<[1], [1], [0], [0], [0, 0, 1, 0], [], []>} : vector<8x8xbf16>, vector<8x8xbf16>, vector<8x8xf32> -> vector<8x8xf32>
    %113 = arith.addf %112, %108 : vector<8x8xf32>
    %cst_30 = arith.constant dense<0xFF800000> : vector<8xf32>
    %114 = vector.multi_reduction <maximumf>, %113, %cst_30 [1] : vector<8x8xf32> to vector<8xf32>
    %115 = vector.shape_cast %114 : vector<8xf32> to vector<8x1xf32>
    %116 = vector.broadcast %115 : vector<8x1xf32> to vector<8x8xf32>
    %117 = arith.subf %113, %116 : vector<8x8xf32>
    %118 = math.exp %117 : vector<8x8xf32>
    %cst_31 = arith.constant dense<0.000000e+00> : vector<8xf32>
    %119 = vector.multi_reduction <add>, %118, %cst_31 [1] : vector<8x8xf32> to vector<8xf32>
    %120 = vector.shape_cast %119 : vector<8xf32> to vector<8x1xf32>
    %121 = tpu.reciprocal %120 {approx = true} : vector<8x1xf32> -> vector<8x1xf32>
    %122 = vector.broadcast %121 : vector<8x1xf32> to vector<8x8xf32>
    %123 = arith.mulf %118, %122 : vector<8x8xf32>
    %124 = arith.truncf %123 : vector<8x8xf32> to vector<8x8xbf16>
    %cst_32 = arith.constant dense<0.000000e+00> : vector<8x8xf32>
    %125 = tpu.matmul %124, %111, %cst_32 {dimension_numbers = #tpu.dot_dimension_numbers<[1], [0], [0], [1], [0, 0, 1, 1], [], []>} : vector<8x8xbf16>, vector<8x8xbf16>, vector<8x8xf32> -> vector<8x8xf32>
    %126 = vector.extract_strided_slice %47 {offsets = [0, 128], sizes = [8, 128], strides = [1, 1]} : vector<8x512xf32> to vector<8x128xf32>
    %127 = tpu.iota {dimensions = array<i32: 0>} : vector<8x128xi32>
    %c1_i32_33 = arith.constant 1 : i32
    %128 = vector.broadcast %c1_i32_33 : i32 to vector<8x128xi32>
    %129 = arith.addi %127, %128 : vector<8x128xi32>
    %130 = vector.extract_strided_slice %126 {offsets = [0, 127], sizes = [8, 1], strides = [1, 1]} : vector<8x128xf32> to vector<8x1xf32>
    %131 = vector.extract_strided_slice %126 {offsets = [0, 0], sizes = [8, 127], strides = [1, 1]} : vector<8x128xf32> to vector<8x127xf32>
    %132 = tpu.concatenate %130, %131 in 1 : vector<8x1xf32>, vector<8x127xf32> -> vector<8x128xf32>
    %c1_i32_34 = arith.constant 1 : i32
    %133 = vector.broadcast %c1_i32_34 : i32 to vector<8x128xi32>
    %134 = arith.andi %129, %133 : vector<8x128xi32>
    %c0_i32_35 = arith.constant 0 : i32
    %135 = vector.broadcast %c0_i32_35 : i32 to vector<8x128xi32>
    %136 = arith.cmpi ne, %134, %135 : vector<8x128xi32>
    %137 = arith.select %136, %132, %126 : vector<8x128xi1>, vector<8x128xf32>
    %138 = vector.extract_strided_slice %137 {offsets = [0, 126], sizes = [8, 2], strides = [1, 1]} : vector<8x128xf32> to vector<8x2xf32>
    %139 = vector.extract_strided_slice %137 {offsets = [0, 0], sizes = [8, 126], strides = [1, 1]} : vector<8x128xf32> to vector<8x126xf32>
    %140 = tpu.concatenate %138, %139 in 1 : vector<8x2xf32>, vector<8x126xf32> -> vector<8x128xf32>
    %c2_i32_36 = arith.constant 2 : i32
    %141 = vector.broadcast %c2_i32_36 : i32 to vector<8x128xi32>
    %142 = arith.andi %129, %141 : vector<8x128xi32>
    %c0_i32_37 = arith.constant 0 : i32
    %143 = vector.broadcast %c0_i32_37 : i32 to vector<8x128xi32>
    %144 = arith.cmpi ne, %142, %143 : vector<8x128xi32>
    %145 = arith.select %144, %140, %137 : vector<8x128xi1>, vector<8x128xf32>
    %146 = vector.extract_strided_slice %145 {offsets = [0, 124], sizes = [8, 4], strides = [1, 1]} : vector<8x128xf32> to vector<8x4xf32>
    %147 = vector.extract_strided_slice %145 {offsets = [0, 0], sizes = [8, 124], strides = [1, 1]} : vector<8x128xf32> to vector<8x124xf32>
    %148 = tpu.concatenate %146, %147 in 1 : vector<8x4xf32>, vector<8x124xf32> -> vector<8x128xf32>
    %c4_i32_38 = arith.constant 4 : i32
    %149 = vector.broadcast %c4_i32_38 : i32 to vector<8x128xi32>
    %150 = arith.andi %129, %149 : vector<8x128xi32>
    %c0_i32_39 = arith.constant 0 : i32
    %151 = vector.broadcast %c0_i32_39 : i32 to vector<8x128xi32>
    %152 = arith.cmpi ne, %150, %151 : vector<8x128xi32>
    %153 = arith.select %152, %148, %145 : vector<8x128xi1>, vector<8x128xf32>
    %154 = vector.extract_strided_slice %153 {offsets = [0, 120], sizes = [8, 8], strides = [1, 1]} : vector<8x128xf32> to vector<8x8xf32>
    %155 = vector.extract_strided_slice %153 {offsets = [0, 0], sizes = [8, 120], strides = [1, 1]} : vector<8x128xf32> to vector<8x120xf32>
    %156 = tpu.concatenate %154, %155 in 1 : vector<8x8xf32>, vector<8x120xf32> -> vector<8x128xf32>
    %c8_i32_40 = arith.constant 8 : i32
    %157 = vector.broadcast %c8_i32_40 : i32 to vector<8x128xi32>
    %158 = arith.andi %129, %157 : vector<8x128xi32>
    %c0_i32_41 = arith.constant 0 : i32
    %159 = vector.broadcast %c0_i32_41 : i32 to vector<8x128xi32>
    %160 = arith.cmpi ne, %158, %159 : vector<8x128xi32>
    %161 = arith.select %160, %156, %153 : vector<8x128xi1>, vector<8x128xf32>
    %162 = vector.extract_strided_slice %161 {offsets = [0, 112], sizes = [8, 16], strides = [1, 1]} : vector<8x128xf32> to vector<8x16xf32>
    %163 = vector.extract_strided_slice %161 {offsets = [0, 0], sizes = [8, 112], strides = [1, 1]} : vector<8x128xf32> to vector<8x112xf32>
    %164 = tpu.concatenate %162, %163 in 1 : vector<8x16xf32>, vector<8x112xf32> -> vector<8x128xf32>
    %c16_i32_42 = arith.constant 16 : i32
    %165 = vector.broadcast %c16_i32_42 : i32 to vector<8x128xi32>
    %166 = arith.andi %129, %165 : vector<8x128xi32>
    %c0_i32_43 = arith.constant 0 : i32
    %167 = vector.broadcast %c0_i32_43 : i32 to vector<8x128xi32>
    %168 = arith.cmpi ne, %166, %167 : vector<8x128xi32>
    %169 = arith.select %168, %164, %161 : vector<8x128xi1>, vector<8x128xf32>
    %170 = vector.extract_strided_slice %169 {offsets = [0, 96], sizes = [8, 32], strides = [1, 1]} : vector<8x128xf32> to vector<8x32xf32>
    %171 = vector.extract_strided_slice %169 {offsets = [0, 0], sizes = [8, 96], strides = [1, 1]} : vector<8x128xf32> to vector<8x96xf32>
    %172 = tpu.concatenate %170, %171 in 1 : vector<8x32xf32>, vector<8x96xf32> -> vector<8x128xf32>
    %c32_i32_44 = arith.constant 32 : i32
    %173 = vector.broadcast %c32_i32_44 : i32 to vector<8x128xi32>
    %174 = arith.andi %129, %173 : vector<8x128xi32>
    %c0_i32_45 = arith.constant 0 : i32
    %175 = vector.broadcast %c0_i32_45 : i32 to vector<8x128xi32>
    %176 = arith.cmpi ne, %174, %175 : vector<8x128xi32>
    %177 = arith.select %176, %172, %169 : vector<8x128xi1>, vector<8x128xf32>
    %178 = vector.extract_strided_slice %177 {offsets = [0, 64], sizes = [8, 64], strides = [1, 1]} : vector<8x128xf32> to vector<8x64xf32>
    %179 = vector.extract_strided_slice %177 {offsets = [0, 0], sizes = [8, 64], strides = [1, 1]} : vector<8x128xf32> to vector<8x64xf32>
    %180 = tpu.concatenate %178, %179 in 1 : vector<8x64xf32>, vector<8x64xf32> -> vector<8x128xf32>
    %c64_i32_46 = arith.constant 64 : i32
    %181 = vector.broadcast %c64_i32_46 : i32 to vector<8x128xi32>
    %182 = arith.andi %129, %181 : vector<8x128xi32>
    %c0_i32_47 = arith.constant 0 : i32
    %183 = vector.broadcast %c0_i32_47 : i32 to vector<8x128xi32>
    %184 = arith.cmpi ne, %182, %183 : vector<8x128xi32>
    %185 = arith.select %184, %180, %177 : vector<8x128xi1>, vector<8x128xf32>
    %186 = vector.extract_strided_slice %185 {offsets = [0, 0], sizes = [8, 8], strides = [1, 1]} : vector<8x128xf32> to vector<8x8xf32>
    %187 = vector.extract_strided_slice %34 {offsets = [0, 8], sizes = [8, 8], strides = [1, 1]} : vector<8x32xbf16> to vector<8x8xbf16>
    %188 = vector.extract_strided_slice %35 {offsets = [0, 8], sizes = [8, 8], strides = [1, 1]} : vector<8x32xbf16> to vector<8x8xbf16>
    %189 = vector.extract_strided_slice %36 {offsets = [0, 8], sizes = [8, 8], strides = [1, 1]} : vector<8x32xbf16> to vector<8x8xbf16>
    %cst_48 = arith.constant dense<0.000000e+00> : vector<8x8xf32>
    %190 = tpu.matmul %187, %188, %cst_48 {dimension_numbers = #tpu.dot_dimension_numbers<[1], [1], [0], [0], [0, 0, 1, 0], [], []>} : vector<8x8xbf16>, vector<8x8xbf16>, vector<8x8xf32> -> vector<8x8xf32>
    %191 = arith.addf %190, %186 : vector<8x8xf32>
    %cst_49 = arith.constant dense<0xFF800000> : vector<8xf32>
    %192 = vector.multi_reduction <maximumf>, %191, %cst_49 [1] : vector<8x8xf32> to vector<8xf32>
    %193 = vector.shape_cast %192 : vector<8xf32> to vector<8x1xf32>
    %194 = vector.broadcast %193 : vector<8x1xf32> to vector<8x8xf32>
    %195 = arith.subf %191, %194 : vector<8x8xf32>
    %196 = math.exp %195 : vector<8x8xf32>
    %cst_50 = arith.constant dense<0.000000e+00> : vector<8xf32>
    %197 = vector.multi_reduction <add>, %196, %cst_50 [1] : vector<8x8xf32> to vector<8xf32>
    %198 = vector.shape_cast %197 : vector<8xf32> to vector<8x1xf32>
    %199 = tpu.reciprocal %198 {approx = true} : vector<8x1xf32> -> vector<8x1xf32>
    %200 = vector.broadcast %199 : vector<8x1xf32> to vector<8x8xf32>
    %201 = arith.mulf %196, %200 : vector<8x8xf32>
    %202 = arith.truncf %201 : vector<8x8xf32> to vector<8x8xbf16>
    %cst_51 = arith.constant dense<0.000000e+00> : vector<8x8xf32>
    %203 = tpu.matmul %202, %189, %cst_51 {dimension_numbers = #tpu.dot_dimension_numbers<[1], [0], [0], [1], [0, 0, 1, 1], [], []>} : vector<8x8xbf16>, vector<8x8xbf16>, vector<8x8xf32> -> vector<8x8xf32>
    %204 = vector.extract_strided_slice %47 {offsets = [0, 256], sizes = [8, 128], strides = [1, 1]} : vector<8x512xf32> to vector<8x128xf32>
    %205 = tpu.iota {dimensions = array<i32: 0>} : vector<8x128xi32>
    %c1_i32_52 = arith.constant 1 : i32
    %206 = vector.broadcast %c1_i32_52 : i32 to vector<8x128xi32>
    %207 = arith.addi %205, %206 : vector<8x128xi32>
    %208 = vector.extract_strided_slice %204 {offsets = [0, 127], sizes = [8, 1], strides = [1, 1]} : vector<8x128xf32> to vector<8x1xf32>
    %209 = vector.extract_strided_slice %204 {offsets = [0, 0], sizes = [8, 127], strides = [1, 1]} : vector<8x128xf32> to vector<8x127xf32>
    %210 = tpu.concatenate %208, %209 in 1 : vector<8x1xf32>, vector<8x127xf32> -> vector<8x128xf32>
    %c1_i32_53 = arith.constant 1 : i32
    %211 = vector.broadcast %c1_i32_53 : i32 to vector<8x128xi32>
    %212 = arith.andi %207, %211 : vector<8x128xi32>
    %c0_i32_54 = arith.constant 0 : i32
    %213 = vector.broadcast %c0_i32_54 : i32 to vector<8x128xi32>
    %214 = arith.cmpi ne, %212, %213 : vector<8x128xi32>
    %215 = arith.select %214, %210, %204 : vector<8x128xi1>, vector<8x128xf32>
    %216 = vector.extract_strided_slice %215 {offsets = [0, 126], sizes = [8, 2], strides = [1, 1]} : vector<8x128xf32> to vector<8x2xf32>
    %217 = vector.extract_strided_slice %215 {offsets = [0, 0], sizes = [8, 126], strides = [1, 1]} : vector<8x128xf32> to vector<8x126xf32>
    %218 = tpu.concatenate %216, %217 in 1 : vector<8x2xf32>, vector<8x126xf32> -> vector<8x128xf32>
    %c2_i32_55 = arith.constant 2 : i32
    %219 = vector.broadcast %c2_i32_55 : i32 to vector<8x128xi32>
    %220 = arith.andi %207, %219 : vector<8x128xi32>
    %c0_i32_56 = arith.constant 0 : i32
    %221 = vector.broadcast %c0_i32_56 : i32 to vector<8x128xi32>
    %222 = arith.cmpi ne, %220, %221 : vector<8x128xi32>
    %223 = arith.select %222, %218, %215 : vector<8x128xi1>, vector<8x128xf32>
    %224 = vector.extract_strided_slice %223 {offsets = [0, 124], sizes = [8, 4], strides = [1, 1]} : vector<8x128xf32> to vector<8x4xf32>
    %225 = vector.extract_strided_slice %223 {offsets = [0, 0], sizes = [8, 124], strides = [1, 1]} : vector<8x128xf32> to vector<8x124xf32>
    %226 = tpu.concatenate %224, %225 in 1 : vector<8x4xf32>, vector<8x124xf32> -> vector<8x128xf32>
    %c4_i32_57 = arith.constant 4 : i32
    %227 = vector.broadcast %c4_i32_57 : i32 to vector<8x128xi32>
    %228 = arith.andi %207, %227 : vector<8x128xi32>
    %c0_i32_58 = arith.constant 0 : i32
    %229 = vector.broadcast %c0_i32_58 : i32 to vector<8x128xi32>
    %230 = arith.cmpi ne, %228, %229 : vector<8x128xi32>
    %231 = arith.select %230, %226, %223 : vector<8x128xi1>, vector<8x128xf32>
    %232 = vector.extract_strided_slice %231 {offsets = [0, 120], sizes = [8, 8], strides = [1, 1]} : vector<8x128xf32> to vector<8x8xf32>
    %233 = vector.extract_strided_slice %231 {offsets = [0, 0], sizes = [8, 120], strides = [1, 1]} : vector<8x128xf32> to vector<8x120xf32>
    %234 = tpu.concatenate %232, %233 in 1 : vector<8x8xf32>, vector<8x120xf32> -> vector<8x128xf32>
    %c8_i32_59 = arith.constant 8 : i32
    %235 = vector.broadcast %c8_i32_59 : i32 to vector<8x128xi32>
    %236 = arith.andi %207, %235 : vector<8x128xi32>
    %c0_i32_60 = arith.constant 0 : i32
    %237 = vector.broadcast %c0_i32_60 : i32 to vector<8x128xi32>
    %238 = arith.cmpi ne, %236, %237 : vector<8x128xi32>
    %239 = arith.select %238, %234, %231 : vector<8x128xi1>, vector<8x128xf32>
    %240 = vector.extract_strided_slice %239 {offsets = [0, 112], sizes = [8, 16], strides = [1, 1]} : vector<8x128xf32> to vector<8x16xf32>
    %241 = vector.extract_strided_slice %239 {offsets = [0, 0], sizes = [8, 112], strides = [1, 1]} : vector<8x128xf32> to vector<8x112xf32>
    %242 = tpu.concatenate %240, %241 in 1 : vector<8x16xf32>, vector<8x112xf32> -> vector<8x128xf32>
    %c16_i32_61 = arith.constant 16 : i32
    %243 = vector.broadcast %c16_i32_61 : i32 to vector<8x128xi32>
    %244 = arith.andi %207, %243 : vector<8x128xi32>
    %c0_i32_62 = arith.constant 0 : i32
    %245 = vector.broadcast %c0_i32_62 : i32 to vector<8x128xi32>
    %246 = arith.cmpi ne, %244, %245 : vector<8x128xi32>
    %247 = arith.select %246, %242, %239 : vector<8x128xi1>, vector<8x128xf32>
    %248 = vector.extract_strided_slice %247 {offsets = [0, 96], sizes = [8, 32], strides = [1, 1]} : vector<8x128xf32> to vector<8x32xf32>
    %249 = vector.extract_strided_slice %247 {offsets = [0, 0], sizes = [8, 96], strides = [1, 1]} : vector<8x128xf32> to vector<8x96xf32>
    %250 = tpu.concatenate %248, %249 in 1 : vector<8x32xf32>, vector<8x96xf32> -> vector<8x128xf32>
    %c32_i32_63 = arith.constant 32 : i32
    %251 = vector.broadcast %c32_i32_63 : i32 to vector<8x128xi32>
    %252 = arith.andi %207, %251 : vector<8x128xi32>
    %c0_i32_64 = arith.constant 0 : i32
    %253 = vector.broadcast %c0_i32_64 : i32 to vector<8x128xi32>
    %254 = arith.cmpi ne, %252, %253 : vector<8x128xi32>
    %255 = arith.select %254, %250, %247 : vector<8x128xi1>, vector<8x128xf32>
    %256 = vector.extract_strided_slice %255 {offsets = [0, 64], sizes = [8, 64], strides = [1, 1]} : vector<8x128xf32> to vector<8x64xf32>
    %257 = vector.extract_strided_slice %255 {offsets = [0, 0], sizes = [8, 64], strides = [1, 1]} : vector<8x128xf32> to vector<8x64xf32>
    %258 = tpu.concatenate %256, %257 in 1 : vector<8x64xf32>, vector<8x64xf32> -> vector<8x128xf32>
    %c64_i32_65 = arith.constant 64 : i32
    %259 = vector.broadcast %c64_i32_65 : i32 to vector<8x128xi32>
    %260 = arith.andi %207, %259 : vector<8x128xi32>
    %c0_i32_66 = arith.constant 0 : i32
    %261 = vector.broadcast %c0_i32_66 : i32 to vector<8x128xi32>
    %262 = arith.cmpi ne, %260, %261 : vector<8x128xi32>
    %263 = arith.select %262, %258, %255 : vector<8x128xi1>, vector<8x128xf32>
    %264 = vector.extract_strided_slice %263 {offsets = [0, 0], sizes = [8, 8], strides = [1, 1]} : vector<8x128xf32> to vector<8x8xf32>
    %265 = vector.extract_strided_slice %34 {offsets = [0, 16], sizes = [8, 8], strides = [1, 1]} : vector<8x32xbf16> to vector<8x8xbf16>
    %266 = vector.extract_strided_slice %35 {offsets = [0, 16], sizes = [8, 8], strides = [1, 1]} : vector<8x32xbf16> to vector<8x8xbf16>
    %267 = vector.extract_strided_slice %36 {offsets = [0, 16], sizes = [8, 8], strides = [1, 1]} : vector<8x32xbf16> to vector<8x8xbf16>
    %cst_67 = arith.constant dense<0.000000e+00> : vector<8x8xf32>
    %268 = tpu.matmul %265, %266, %cst_67 {dimension_numbers = #tpu.dot_dimension_numbers<[1], [1], [0], [0], [0, 0, 1, 0], [], []>} : vector<8x8xbf16>, vector<8x8xbf16>, vector<8x8xf32> -> vector<8x8xf32>
    %269 = arith.addf %268, %264 : vector<8x8xf32>
    %cst_68 = arith.constant dense<0xFF800000> : vector<8xf32>
    %270 = vector.multi_reduction <maximumf>, %269, %cst_68 [1] : vector<8x8xf32> to vector<8xf32>
    %271 = vector.shape_cast %270 : vector<8xf32> to vector<8x1xf32>
    %272 = vector.broadcast %271 : vector<8x1xf32> to vector<8x8xf32>
    %273 = arith.subf %269, %272 : vector<8x8xf32>
    %274 = math.exp %273 : vector<8x8xf32>
    %cst_69 = arith.constant dense<0.000000e+00> : vector<8xf32>
    %275 = vector.multi_reduction <add>, %274, %cst_69 [1] : vector<8x8xf32> to vector<8xf32>
    %276 = vector.shape_cast %275 : vector<8xf32> to vector<8x1xf32>
    %277 = tpu.reciprocal %276 {approx = true} : vector<8x1xf32> -> vector<8x1xf32>
    %278 = vector.broadcast %277 : vector<8x1xf32> to vector<8x8xf32>
    %279 = arith.mulf %274, %278 : vector<8x8xf32>
    %280 = arith.truncf %279 : vector<8x8xf32> to vector<8x8xbf16>
    %cst_70 = arith.constant dense<0.000000e+00> : vector<8x8xf32>
    %281 = tpu.matmul %280, %267, %cst_70 {dimension_numbers = #tpu.dot_dimension_numbers<[1], [0], [0], [1], [0, 0, 1, 1], [], []>} : vector<8x8xbf16>, vector<8x8xbf16>, vector<8x8xf32> -> vector<8x8xf32>
    %282 = vector.extract_strided_slice %47 {offsets = [0, 384], sizes = [8, 128], strides = [1, 1]} : vector<8x512xf32> to vector<8x128xf32>
    %283 = tpu.iota {dimensions = array<i32: 0>} : vector<8x128xi32>
    %c1_i32_71 = arith.constant 1 : i32
    %284 = vector.broadcast %c1_i32_71 : i32 to vector<8x128xi32>
    %285 = arith.addi %283, %284 : vector<8x128xi32>
    %286 = vector.extract_strided_slice %282 {offsets = [0, 127], sizes = [8, 1], strides = [1, 1]} : vector<8x128xf32> to vector<8x1xf32>
    %287 = vector.extract_strided_slice %282 {offsets = [0, 0], sizes = [8, 127], strides = [1, 1]} : vector<8x128xf32> to vector<8x127xf32>
    %288 = tpu.concatenate %286, %287 in 1 : vector<8x1xf32>, vector<8x127xf32> -> vector<8x128xf32>
    %c1_i32_72 = arith.constant 1 : i32
    %289 = vector.broadcast %c1_i32_72 : i32 to vector<8x128xi32>
    %290 = arith.andi %285, %289 : vector<8x128xi32>
    %c0_i32_73 = arith.constant 0 : i32
    %291 = vector.broadcast %c0_i32_73 : i32 to vector<8x128xi32>
    %292 = arith.cmpi ne, %290, %291 : vector<8x128xi32>
    %293 = arith.select %292, %288, %282 : vector<8x128xi1>, vector<8x128xf32>
    %294 = vector.extract_strided_slice %293 {offsets = [0, 126], sizes = [8, 2], strides = [1, 1]} : vector<8x128xf32> to vector<8x2xf32>
    %295 = vector.extract_strided_slice %293 {offsets = [0, 0], sizes = [8, 126], strides = [1, 1]} : vector<8x128xf32> to vector<8x126xf32>
    %296 = tpu.concatenate %294, %295 in 1 : vector<8x2xf32>, vector<8x126xf32> -> vector<8x128xf32>
    %c2_i32_74 = arith.constant 2 : i32
    %297 = vector.broadcast %c2_i32_74 : i32 to vector<8x128xi32>
    %298 = arith.andi %285, %297 : vector<8x128xi32>
    %c0_i32_75 = arith.constant 0 : i32
    %299 = vector.broadcast %c0_i32_75 : i32 to vector<8x128xi32>
    %300 = arith.cmpi ne, %298, %299 : vector<8x128xi32>
    %301 = arith.select %300, %296, %293 : vector<8x128xi1>, vector<8x128xf32>
    %302 = vector.extract_strided_slice %301 {offsets = [0, 124], sizes = [8, 4], strides = [1, 1]} : vector<8x128xf32> to vector<8x4xf32>
    %303 = vector.extract_strided_slice %301 {offsets = [0, 0], sizes = [8, 124], strides = [1, 1]} : vector<8x128xf32> to vector<8x124xf32>
    %304 = tpu.concatenate %302, %303 in 1 : vector<8x4xf32>, vector<8x124xf32> -> vector<8x128xf32>
    %c4_i32_76 = arith.constant 4 : i32
    %305 = vector.broadcast %c4_i32_76 : i32 to vector<8x128xi32>
    %306 = arith.andi %285, %305 : vector<8x128xi32>
    %c0_i32_77 = arith.constant 0 : i32
    %307 = vector.broadcast %c0_i32_77 : i32 to vector<8x128xi32>
    %308 = arith.cmpi ne, %306, %307 : vector<8x128xi32>
    %309 = arith.select %308, %304, %301 : vector<8x128xi1>, vector<8x128xf32>
    %310 = vector.extract_strided_slice %309 {offsets = [0, 120], sizes = [8, 8], strides = [1, 1]} : vector<8x128xf32> to vector<8x8xf32>
    %311 = vector.extract_strided_slice %309 {offsets = [0, 0], sizes = [8, 120], strides = [1, 1]} : vector<8x128xf32> to vector<8x120xf32>
    %312 = tpu.concatenate %310, %311 in 1 : vector<8x8xf32>, vector<8x120xf32> -> vector<8x128xf32>
    %c8_i32_78 = arith.constant 8 : i32
    %313 = vector.broadcast %c8_i32_78 : i32 to vector<8x128xi32>
    %314 = arith.andi %285, %313 : vector<8x128xi32>
    %c0_i32_79 = arith.constant 0 : i32
    %315 = vector.broadcast %c0_i32_79 : i32 to vector<8x128xi32>
    %316 = arith.cmpi ne, %314, %315 : vector<8x128xi32>
    %317 = arith.select %316, %312, %309 : vector<8x128xi1>, vector<8x128xf32>
    %318 = vector.extract_strided_slice %317 {offsets = [0, 112], sizes = [8, 16], strides = [1, 1]} : vector<8x128xf32> to vector<8x16xf32>
    %319 = vector.extract_strided_slice %317 {offsets = [0, 0], sizes = [8, 112], strides = [1, 1]} : vector<8x128xf32> to vector<8x112xf32>
    %320 = tpu.concatenate %318, %319 in 1 : vector<8x16xf32>, vector<8x112xf32> -> vector<8x128xf32>
    %c16_i32_80 = arith.constant 16 : i32
    %321 = vector.broadcast %c16_i32_80 : i32 to vector<8x128xi32>
    %322 = arith.andi %285, %321 : vector<8x128xi32>
    %c0_i32_81 = arith.constant 0 : i32
    %323 = vector.broadcast %c0_i32_81 : i32 to vector<8x128xi32>
    %324 = arith.cmpi ne, %322, %323 : vector<8x128xi32>
    %325 = arith.select %324, %320, %317 : vector<8x128xi1>, vector<8x128xf32>
    %326 = vector.extract_strided_slice %325 {offsets = [0, 96], sizes = [8, 32], strides = [1, 1]} : vector<8x128xf32> to vector<8x32xf32>
    %327 = vector.extract_strided_slice %325 {offsets = [0, 0], sizes = [8, 96], strides = [1, 1]} : vector<8x128xf32> to vector<8x96xf32>
    %328 = tpu.concatenate %326, %327 in 1 : vector<8x32xf32>, vector<8x96xf32> -> vector<8x128xf32>
    %c32_i32_82 = arith.constant 32 : i32
    %329 = vector.broadcast %c32_i32_82 : i32 to vector<8x128xi32>
    %330 = arith.andi %285, %329 : vector<8x128xi32>
    %c0_i32_83 = arith.constant 0 : i32
    %331 = vector.broadcast %c0_i32_83 : i32 to vector<8x128xi32>
    %332 = arith.cmpi ne, %330, %331 : vector<8x128xi32>
    %333 = arith.select %332, %328, %325 : vector<8x128xi1>, vector<8x128xf32>
    %334 = vector.extract_strided_slice %333 {offsets = [0, 64], sizes = [8, 64], strides = [1, 1]} : vector<8x128xf32> to vector<8x64xf32>
    %335 = vector.extract_strided_slice %333 {offsets = [0, 0], sizes = [8, 64], strides = [1, 1]} : vector<8x128xf32> to vector<8x64xf32>
    %336 = tpu.concatenate %334, %335 in 1 : vector<8x64xf32>, vector<8x64xf32> -> vector<8x128xf32>
    %c64_i32_84 = arith.constant 64 : i32
    %337 = vector.broadcast %c64_i32_84 : i32 to vector<8x128xi32>
    %338 = arith.andi %285, %337 : vector<8x128xi32>
    %c0_i32_85 = arith.constant 0 : i32
    %339 = vector.broadcast %c0_i32_85 : i32 to vector<8x128xi32>
    %340 = arith.cmpi ne, %338, %339 : vector<8x128xi32>
    %341 = arith.select %340, %336, %333 : vector<8x128xi1>, vector<8x128xf32>
    %342 = vector.extract_strided_slice %341 {offsets = [0, 0], sizes = [8, 8], strides = [1, 1]} : vector<8x128xf32> to vector<8x8xf32>
    %343 = vector.extract_strided_slice %34 {offsets = [0, 24], sizes = [8, 8], strides = [1, 1]} : vector<8x32xbf16> to vector<8x8xbf16>
    %344 = vector.extract_strided_slice %35 {offsets = [0, 24], sizes = [8, 8], strides = [1, 1]} : vector<8x32xbf16> to vector<8x8xbf16>
    %345 = vector.extract_strided_slice %36 {offsets = [0, 24], sizes = [8, 8], strides = [1, 1]} : vector<8x32xbf16> to vector<8x8xbf16>
    %cst_86 = arith.constant dense<0.000000e+00> : vector<8x8xf32>
    %346 = tpu.matmul %343, %344, %cst_86 {dimension_numbers = #tpu.dot_dimension_numbers<[1], [1], [0], [0], [0, 0, 1, 0], [], []>} : vector<8x8xbf16>, vector<8x8xbf16>, vector<8x8xf32> -> vector<8x8xf32>
    %347 = arith.addf %346, %342 : vector<8x8xf32>
    %cst_87 = arith.constant dense<0xFF800000> : vector<8xf32>
    %348 = vector.multi_reduction <maximumf>, %347, %cst_87 [1] : vector<8x8xf32> to vector<8xf32>
    %349 = vector.shape_cast %348 : vector<8xf32> to vector<8x1xf32>
    %350 = vector.broadcast %349 : vector<8x1xf32> to vector<8x8xf32>
    %351 = arith.subf %347, %350 : vector<8x8xf32>
    %352 = math.exp %351 : vector<8x8xf32>
    %cst_88 = arith.constant dense<0.000000e+00> : vector<8xf32>
    %353 = vector.multi_reduction <add>, %352, %cst_88 [1] : vector<8x8xf32> to vector<8xf32>
    %354 = vector.shape_cast %353 : vector<8xf32> to vector<8x1xf32>
    %355 = tpu.reciprocal %354 {approx = true} : vector<8x1xf32> -> vector<8x1xf32>
    %356 = vector.broadcast %355 : vector<8x1xf32> to vector<8x8xf32>
    %357 = arith.mulf %352, %356 : vector<8x8xf32>
    %358 = arith.truncf %357 : vector<8x8xf32> to vector<8x8xbf16>
    %cst_89 = arith.constant dense<0.000000e+00> : vector<8x8xf32>
    %359 = tpu.matmul %358, %345, %cst_89 {dimension_numbers = #tpu.dot_dimension_numbers<[1], [0], [0], [1], [0, 0, 1, 1], [], []>} : vector<8x8xbf16>, vector<8x8xbf16>, vector<8x8xf32> -> vector<8x8xf32>
    %360 = tpu.concatenate %125, %203, %281, %359 in 1 : vector<8x8xf32>, vector<8x8xf32>, vector<8x8xf32>, vector<8x8xf32> -> vector<8x32xf32>
    %361 = arith.truncf %360 : vector<8x32xf32> to vector<8x32xbf16>
    %c0_90 = arith.constant 0 : index
    %c0_91 = arith.constant 0 : index
    %362 = vector.load %arg7[%c0_90, %c0_91] : memref<32x32xbf16, #tpu.memory_space<vmem>>, vector<32x32xbf16>
    %cst_92 = arith.constant dense<0.000000e+00> : vector<8x32xf32>
    %363 = tpu.matmul %361, %362, %cst_92 {dimension_numbers = #tpu.dot_dimension_numbers<[1], [0], [0], [1], [0, 0, 1, 1], [], []>} : vector<8x32xbf16>, vector<32x32xbf16>, vector<8x32xf32> -> vector<8x32xf32>
    %c0_93 = arith.constant 0 : index
    %c0_94 = arith.constant 0 : index
    %364 = vector.load %arg8[%c0_93, %c0_94] : memref<1x32xf32, #tpu.memory_space<vmem>>, vector<1x32xf32>
    %365 = vector.broadcast %364 : vector<1x32xf32> to vector<8x32xf32>
    %366 = arith.addf %363, %365 : vector<8x32xf32>
    %c0_95 = arith.constant 0 : index
    %c0_96 = arith.constant 0 : index
    %c0_97 = arith.constant 0 : index
    %367 = vector.load %arg9[%c0_95, %c0_96, %c0_97] : memref<1x8x32xf32, #tpu.memory_space<vmem>>, vector<1x8x32xf32>
    %368 = vector.shape_cast %367 : vector<1x8x32xf32> to vector<8x32xf32>
    %369 = vector.shape_cast %366 : vector<8x32xf32> to vector<1x8x32xf32>
    tpu.vector_store %arg9[%c0_95, %c0_96, %c0_97], %369 {strides = array<i32>} : memref<1x8x32xf32, #tpu.memory_space<vmem>>, vector<1x8x32xf32>,
    %370 = vector.shape_cast %123 : vector<8x8xf32> to vector<1x8x8xf32>
    %371 = vector.shape_cast %201 : vector<8x8xf32> to vector<1x8x8xf32>
    %372 = vector.shape_cast %279 : vector<8x8xf32> to vector<1x8x8xf32>
    %373 = vector.shape_cast %357 : vector<8x8xf32> to vector<1x8x8xf32>
    %374 = tpu.concatenate %370, %371, %372, %373 in 0 : vector<1x8x8xf32>, vector<1x8x8xf32>, vector<1x8x8xf32>, vector<1x8x8xf32> -> vector<4x8x8xf32>
    %c0_98 = arith.constant 0 : index
    %c0_99 = arith.constant 0 : index
    %c0_100 = arith.constant 0 : index
    %c0_101 = arith.constant 0 : index
    %375 = vector.load %arg10[%c0_98, %c0_99, %c0_100, %c0_101] : memref<1x4x8x8xf32, #tpu.memory_space<vmem>>, vector<1x4x8x8xf32>
    %376 = vector.shape_cast %375 : vector<1x4x8x8xf32> to vector<4x8x8xf32>
    %377 = vector.shape_cast %374 : vector<4x8x8xf32> to vector<1x4x8x8xf32>
    tpu.vector_store %arg10[%c0_98, %c0_99, %c0_100, %c0_101], %377 {strides = array<i32>} : memref<1x4x8x8xf32, #tpu.memory_space<vmem>>, vector<1x4x8x8xf32>,
    return
  }
  func.func @transform_0(%arg0: i32) -> (i32, i32, i32) {
    %c0_i32 = arith.constant 0 : i32
    %c0_i32_0 = arith.constant 0 : i32
    %c0_i32_1 = arith.constant 0 : i32
    return %arg0, %c0_i32, %c0_i32_0 : i32, i32, i32
  }
  func.func @transform_1(%arg0: i32) -> (i32, i32, i32) {
    %c0_i32 = arith.constant 0 : i32
    %c0_i32_0 = arith.constant 0 : i32
    %c0_i32_1 = arith.constant 0 : i32
    return %arg0, %c0_i32, %c0_i32_0 : i32, i32, i32
  }
  func.func @transform_2(%arg0: i32) -> (i32, i32, i32) {
    %c0_i32 = arith.constant 0 : i32
    %c0_i32_0 = arith.constant 0 : i32
    %c0_i32_1 = arith.constant 0 : i32
    return %arg0, %c0_i32, %c0_i32_0 : i32, i32, i32
  }
  func.func @transform_3(%arg0: i32) -> (i32, i32, i32) {
    %c0_i32 = arith.constant 0 : i32
    %c0_i32_0 = arith.constant 0 : i32
    %c0_i32_1 = arith.constant 0 : i32
    %c0_i32_2 = arith.constant 0 : i32
    return %c0_i32, %c0_i32_0, %c0_i32_1 : i32, i32, i32
  }
  func.func @transform_4(%arg0: i32) -> (i32, i32, i32) {
    %c0_i32 = arith.constant 0 : i32
    %c0_i32_0 = arith.constant 0 : i32
    %c0_i32_1 = arith.constant 0 : i32
    %c0_i32_2 = arith.constant 0 : i32
    return %c0_i32, %c0_i32_0, %c0_i32_1 : i32, i32, i32
  }
  func.func @transform_5(%arg0: i32) -> (i32, i32) {
    %c0_i32 = arith.constant 0 : i32
    %c0_i32_0 = arith.constant 0 : i32
    %c0_i32_1 = arith.constant 0 : i32
    return %c0_i32, %c0_i32_0 : i32, i32
  }
  func.func @transform_6(%arg0: i32) -> (i32, i32) {
    %c0_i32 = arith.constant 0 : i32
    %c0_i32_0 = arith.constant 0 : i32
    %c0_i32_1 = arith.constant 0 : i32
    return %c0_i32, %c0_i32_0 : i32, i32
  }
  func.func @transform_7(%arg0: i32) -> (i32, i32) {
    %c0_i32 = arith.constant 0 : i32
    %c0_i32_0 = arith.constant 0 : i32
    %c0_i32_1 = arith.constant 0 : i32
    return %c0_i32, %c0_i32_0 : i32, i32
  }
  func.func @transform_8(%arg0: i32) -> (i32, i32, i32) {
    %c0_i32 = arith.constant 0 : i32
    %c0_i32_0 = arith.constant 0 : i32
    %c0_i32_1 = arith.constant 0 : i32
    return %arg0, %c0_i32, %c0_i32_0 : i32, i32, i32
  }
  func.func @transform_9(%arg0: i32) -> (i32, i32, i32, i32) {
    %c0_i32 = arith.constant 0 : i32
    %c0_i32_0 = arith.constant 0 : i32
    %c0_i32_1 = arith.constant 0 : i32
    %c0_i32_2 = arith.constant 0 : i32
    return %arg0, %c0_i32, %c0_i32_0, %c0_i32_1 : i32, i32, i32, i32
  }
}

</mosaic_0001>

<llo_original>
// kernel: tpu_custom_call.1
$region0: #{tpu_custom_call.1}
  #allocation0 [shape = 'u32[]', space=smem, size = 0x4, offset = 0x4, fixed_abs, tag = 'smem constant byte address 0x4 - core index']
  #allocation1 [shape = 'u32[144,128]{1,0:T(1,128)}', space=vmem, size = 0x12000, scoped, tag = 'internal scratch']
  %s0 = inlined_call_operand.hbm [shape: f32[8,128], index: 0, kind: input, shape index: {}]
  %s1 = inlined_call_operand.hbm [shape: f32[8,128], index: 1, kind: output, shape index: {}]
  %s2 = sld [smem:[#allocation0]]
  $region18: #{tpu_custom_call.1} parent=0
    _
  %s4 = ssub.s32 1, %s2
  %s5 = scalar_select 0, %s4, %s2
  $region1: #{tpu_custom_call.1} parent=0
    #allocation2 [shape = 'u8[4096]{0}', space=vmem, size = 0x1000, scoped, tag = 'input window, operand 0, single buffered']
    #allocation3 [shape = 's32[1]{0}', space=sflag, size = 0x4, scoped, tag = 'scoped memory for tpu_custom_call.1']
    #allocation4 [shape = 's32[1]{0}', space=sflag, size = 0x4, scoped, tag = 'scoped memory for tpu_custom_call.1']
    #allocation5 [shape = 'u8[4096]{0}', space=vmem, size = 0x1000, scoped, tag = 'output window, operand 0, single buffered']
    %6 = vsyncpa [#allocation3], 0
    %7 = vsyncpa [#allocation4], 0
    // Predicated region
    $region2: #{tpu_custom_call.1} parent=1 // pred_check
      _
    $region3: #{tpu_custom_call.1} parent=1 // pred_check_branch
      %9 = sbr.rel (0) target = $region5
    $region4: #{tpu_custom_call.1} parent=1 // pred_region
      %s11 = ssub.s32 128, 128
      %12 = vsyncadd [#allocation3], %s11
      %s14 = sshll.u32 [#allocation2], 4
      %s15 = int_to_ptr.vmem [resolvable:$true] %s14
      %17 = dma.hbm_to_vmem [thread:$0]  %s0, 128, %s15, [#allocation3]
    $region5: #{tpu_custom_call.1} parent=1 // pred_fallthru
      _
    // Predicated region
    $region6: #{tpu_custom_call.1} parent=1 // pred_check
      _
    $region7: #{tpu_custom_call.1} parent=1 // pred_check_branch
      %19 = sbr.rel (0) target = $region9
    $region8: #{tpu_custom_call.1} parent=1 // pred_region
      %20 = dma.done [#allocation3], 128
    $region9: #{tpu_custom_call.1} parent=1 // pred_fallthru
      _
    %v21 = vld [vmem:[#allocation2] sm:$0xff]
    %s23 = sor.u32 256, 1
    %24 = vrot.lane.b32.xlu0 %v21, %s23
    %v25 = vpop.permute.xlu0 %24
    %26 = vst [vmem:[#allocation5] sm:$0xff] %v25
    // Predicated region
    $region10: #{tpu_custom_call.1} parent=1 // pred_check
      _
    $region11: #{tpu_custom_call.1} parent=1 // pred_check_branch
      %28 = sbr.rel (0) target = $region13
    $region12: #{tpu_custom_call.1} parent=1 // pred_region
      %s30 = ssub.s32 128, 128
      %31 = vsyncadd [#allocation4], %s30
      %s33 = sshll.u32 [#allocation5], 4
      %s34 = int_to_ptr.vmem [resolvable:$true] %s33
      %36 = dma.vmem_to_hbm [thread:$0]  %s34, 128, %s1, [#allocation4]
    $region13: #{tpu_custom_call.1} parent=1 // pred_fallthru
      _
    // Predicated region
    $region14: #{tpu_custom_call.1} parent=1 // pred_check
      _
    $region15: #{tpu_custom_call.1} parent=1 // pred_check_branch
      %38 = sbr.rel (0) target = $region17
    $region16: #{tpu_custom_call.1} parent=1 // pred_region
      %39 = dma.done [#allocation4], 128
    $region17: #{tpu_custom_call.1} parent=1 // pred_fallthru
      _
    %40 = vsyncpa [#allocation3], 1
    %41 = vsyncpa [#allocation4], 1

// kernel: tpu_custom_call.1
$region0: #{tpu_custom_call.1}
  #allocation0 [shape = 'u32[]', space=smem, size = 0x4, offset = 0x4, fixed_abs, tag = 'smem constant byte address 0x4 - core index']
  #allocation1 [shape = 'u32[144,128]{1,0:T(1,128)}', space=vmem, size = 0x12000, scoped, tag = 'internal scratch']
  %s0 = inlined_call_operand.hbm [shape: f32[2,8,32], index: 0, kind: input, shape index: {}]
  %s1 = inlined_call_operand.hbm [shape: f32[2,8,32], index: 1, kind: input, shape index: {}]
  %s2 = inlined_call_operand.hbm [shape: f32[2,8,32], index: 2, kind: input, shape index: {}]
  %s3 = inlined_call_operand.hbm [shape: bf16[3,32,32], index: 3, kind: input, shape index: {}]
  %s4 = inlined_call_operand.vmem [shape: f32[3,1,32], index: 4, kind: input, shape index: {}]
  %s5 = inlined_call_operand.hbm [shape: bf16[32,512], index: 5, kind: input, shape index: {}]
  %s6 = inlined_call_operand.hbm [shape: bf16[32,32], index: 6, kind: input, shape index: {}]
  %s7 = inlined_call_operand.vmem [shape: f32[1,32], index: 7, kind: input, shape index: {}]
  %s8 = inlined_call_operand.hbm [shape: f32[2,8,32], index: 8, kind: output, shape index: {0}]
  %s9 = inlined_call_operand.hbm [shape: f32[2,4,8,8], index: 9, kind: output, shape index: {1}]
  %10 = xla_tuple %s8, %s9
  %s11 = sld [smem:[#allocation0]]
  $region97: #{tpu_custom_call.1} parent=0
    _
  %s13 = ssub.s32 1, %s11
  %s14 = scalar_select 0, %s13, %s11
  $region1: #{tpu_custom_call.1} parent=0
    #allocation2 [shape = 'u8[8192]{0}', space=vmem, size = 0x2000, scoped, tag = 'input window, operand 0']
    #allocation3 [shape = 's32[2]{0}', space=sflag, size = 0x8, scoped, tag = 'scoped memory for tpu_custom_call.1']
    #allocation4 [shape = 's32[2]{0}', space=sflag, size = 0x8, scoped, tag = 'scoped memory for tpu_custom_call.1']
    #allocation5 [shape = 'u8[8192]{0}', space=vmem, size = 0x2000, scoped, tag = 'input window, operand 1']
    #allocation6 [shape = 's32[2]{0}', space=sflag, size = 0x8, scoped, tag = 'scoped memory for tpu_custom_call.1']
    #allocation7 [shape = 'u8[8192]{0}', space=vmem, size = 0x2000, scoped, tag = 'input window, operand 2']
    #allocation8 [shape = 'u8[24576]{0}', space=vmem, size = 0x6000, scoped, tag = 'input window, operand 3, single buffered']
    #allocation9 [shape = 's32[1]{0}', space=sflag, size = 0x4, scoped, tag = 'scoped memory for tpu_custom_call.1']
    #allocation10 [shape = 'u8[32768]{0}', space=vmem, size = 0x8000, scoped, tag = 'input window, operand 5, single buffered']
    #allocation11 [shape = 'u8[8192]{0}', space=vmem, size = 0x2000, scoped, tag = 'input window, operand 6, single buffered']
    #allocation12 [shape = 's32[1]{0}', space=sflag, size = 0x4, scoped, tag = 'scoped memory for tpu_custom_call.1']
    #allocation13 [shape = 'u8[8192]{0}', space=vmem, size = 0x2000, scoped, tag = 'output window, operand 0']
    #allocation14 [shape = 'u8[32768]{0}', space=vmem, size = 0x8000, scoped, tag = 'output window, operand 1']
    #allocation15 [shape = 's32[2]{0}', space=sflag, size = 0x8, scoped, tag = 'scoped memory for tpu_custom_call.1']
    %15 = vsyncpa [#allocation3], 0
    %s16 = scalar_lea.sflag [#allocation3], 1
    %17 = vsyncpa %s16, 0
    %18 = vsyncpa [#allocation6], 0
    %s19 = scalar_lea.sflag [#allocation6], 1
    %20 = vsyncpa %s19, 0
    %21 = vsyncpa [#allocation9], 0
    %22 = vsyncpa [#allocation12], 0
    %23 = vsyncpa [#allocation4], 0
    %s24 = scalar_lea.sflag [#allocation4], 1
    %25 = vsyncpa %s24, 0
    %26 = vsyncpa [#allocation15], 0
    %s27 = scalar_lea.sflag [#allocation15], 1
    %28 = vsyncpa %s27, 0
    loop: start=0, step=1, limit=4
    $region2: #{tpu_custom_call.1} parent=1 // loop_pre_header
      _
    $region3: #{tpu_custom_call.1} parent=1 // loop_header
      %s30 = sphi 0, %s34
      %p31 = scmp.ge.s32.totalorder %s30, 4
      %s40 = sphi 0, %s42
      %s43 = sphi 0, %s40
      %s44 = sphi 0, %s43
      %s60 = sphi 0, %s44
      %s66 = sphi 0, %s68
      %s69 = sphi 0, %s66
      %s70 = sphi 0, %s69
      %s86 = sphi 0, %s70
      %s92 = sphi 0, %s94
      %s95 = sphi 0, %s92
      %s96 = sphi 0, %s95
      %s112 = sphi 0, %s96
      %s116 = sphi 0, %s116
      %s118 = sphi 0, %s116
      %s119 = sphi 0, %s118
      %s133 = sphi 0, %s119
      %s137 = sphi 0, %s137
      %s139 = sphi 0, %s137
      %s140 = sphi 0, %s139
      %s154 = sphi 0, %s140
      %s158 = sphi 0, %s158
      %s160 = sphi 0, %s158
      %s161 = sphi 0, %s160
      %s175 = sphi 0, %s161
      %s179 = sphi 0, %s179
      %s181 = sphi 0, %s179
      %s182 = sphi 0, %s181
      %s196 = sphi 0, %s182
      %s200 = sphi 0, %s200
      %s202 = sphi 0, %s200
      %s203 = sphi 0, %s202
      %s217 = sphi 0, %s203
      %s223 = sphi 0, %s225
      %s226 = sphi 0, %s223
      %s227 = sphi 0, %s226
      %s243 = sphi 0, %s227
      %s249 = sphi 0, %s251
      %s252 = sphi 0, %s249
      %s253 = sphi 0, %s252
      %s269 = sphi 0, %s253
    $region4: #{tpu_custom_call.1} parent=1 // loop_header_branch
      %33 = sbr.rel (%p31) target = $region8
    $region5: #{tpu_custom_call.1} parent=1 // loop_body
      %s35 = ssub.s32 %s30, 1
      %s36 = ssub.s32 %s30, 2
      %s37 = sadd.s32 %s30, 1
      %s38 = ssub.s32 %s30, %s37
      %p39 = scmp.eq.s32.totalorder %s38, 0
      %s41 = sadd.s32 %s40, 1
      %s42 = scalar_select %p39, %s40, %s41
      %p45 = pneg %p39
      %p46 = scmp.eq.s32.totalorder %s30, 1
      %p47 = por %p45, %p46
      %p48 = scmp.ne.s32.totalorder %s40, %s43
      %p49 = scmp.eq.s32.totalorder %s30, 0
      %p50 = por %p48, %p49
      %p51 = scmp.ne.s32.totalorder %s40, %s43
      %p52 = scmp.eq.s32.totalorder %s35, 1
      %p53 = por %p51, %p52
      %p54 = scmp.ne.s32.totalorder %s43, %s44
      %p55 = scmp.eq.s32.totalorder %s35, 0
      %p56 = por %p54, %p55
      %p57 = scmp.ne.s32.totalorder %s43, %s44
      %p58 = scmp.eq.s32.totalorder %s36, 1
      %p59 = por %p57, %p58
      %p61 = scmp.ne.s32.totalorder %s44, %s60
      %p62 = scmp.eq.s32.totalorder %s36, 0
      %p63 = por %p61, %p62
      %s64 = ssub.s32 %s30, %s37
      %p65 = scmp.eq.s32.totalorder %s64, 0
      %s67 = sadd.s32 %s66, 1
      %s68 = scalar_select %p65, %s66, %s67
      %p71 = pneg %p65
      %p72 = scmp.eq.s32.totalorder %s30, 1
      %p73 = por %p71, %p72
      %p74 = scmp.ne.s32.totalorder %s66, %s69
      %p75 = scmp.eq.s32.totalorder %s30, 0
      %p76 = por %p74, %p75
      %p77 = scmp.ne.s32.totalorder %s66, %s69
      %p78 = scmp.eq.s32.totalorder %s35, 1
      %p79 = por %p77, %p78
      %p80 = scmp.ne.s32.totalorder %s69, %s70
      %p81 = scmp.eq.s32.totalorder %s35, 0
      %p82 = por %p80, %p81
      %p83 = scmp.ne.s32.totalorder %s69, %s70
      %p84 = scmp.eq.s32.totalorder %s36, 1
      %p85 = por %p83, %p84
      %p87 = scmp.ne.s32.totalorder %s70, %s86
      %p88 = scmp.eq.s32.totalorder %s36, 0
      %p89 = por %p87, %p88
      %s90 = ssub.s32 %s30, %s37
      %p91 = scmp.eq.s32.totalorder %s90, 0
      %s93 = sadd.s32 %s92, 1
      %s94 = scalar_select %p91, %s92, %s93
      %p97 = pneg %p91
      %p98 = scmp.eq.s32.totalorder %s30, 1
      %p99 = por %p97, %p98
      %p100 = scmp.ne.s32.totalorder %s92, %s95
      %p101 = scmp.eq.s32.totalorder %s30, 0
      %p102 = por %p100, %p101
      %p103 = scmp.ne.s32.totalorder %s92, %s95
      %p104 = scmp.eq.s32.totalorder %s35, 1
      %p105 = por %p103, %p104
      %p106 = scmp.ne.s32.totalorder %s95, %s96
      %p107 = scmp.eq.s32.totalorder %s35, 0
      %p108 = por %p106, %p107
      %p109 = scmp.ne.s32.totalorder %s95, %s96
      %p110 = scmp.eq.s32.totalorder %s36, 1
      %p111 = por %p109, %p110
      %p113 = scmp.ne.s32.totalorder %s96, %s112
      %p114 = scmp.eq.s32.totalorder %s36, 0
      %p115 = por %p113, %p114
      %s117 = sadd.s32 %s116, 1
      %p120 = scmp.eq.s32.totalorder %s30, 1
      %p121 = scmp.ne.s32.totalorder %s116, %s118
      %p122 = scmp.eq.s32.totalorder %s30, 0
      %p123 = por %p121, %p122
      %p124 = scmp.ne.s32.totalorder %s116, %s118
      %p125 = scmp.eq.s32.totalorder %s35, 1
      %p126 = por %p124, %p125
      %p127 = scmp.ne.s32.totalorder %s118, %s119
      %p128 = scmp.eq.s32.totalorder %s35, 0
      %p129 = por %p127, %p128
      %p130 = scmp.ne.s32.totalorder %s118, %s119
      %p131 = scmp.eq.s32.totalorder %s36, 1
      %p132 = por %p130, %p131
      %p134 = scmp.ne.s32.totalorder %s119, %s133
      %p135 = scmp.eq.s32.totalorder %s36, 0
      %p136 = por %p134, %p135
      %s138 = sadd.s32 %s137, 1
      %p141 = scmp.eq.s32.totalorder %s30, 1
      %p142 = scmp.ne.s32.totalorder %s137, %s139
      %p143 = scmp.eq.s32.totalorder %s30, 0
      %p144 = por %p142, %p143
      %p145 = scmp.ne.s32.totalorder %s137, %s139
      %p146 = scmp.eq.s32.totalorder %s35, 1
      %p147 = por %p145, %p146
      %p148 = scmp.ne.s32.totalorder %s139, %s140
      %p149 = scmp.eq.s32.totalorder %s35, 0
      %p150 = por %p148, %p149
      %p151 = scmp.ne.s32.totalorder %s139, %s140
      %p152 = scmp.eq.s32.totalorder %s36, 1
      %p153 = por %p151, %p152
      %p155 = scmp.ne.s32.totalorder %s140, %s154
      %p156 = scmp.eq.s32.totalorder %s36, 0
      %p157 = por %p155, %p156
      %s159 = sadd.s32 %s158, 1
      %p162 = scmp.eq.s32.totalorder %s30, 1
      %p163 = scmp.ne.s32.totalorder %s158, %s160
      %p164 = scmp.eq.s32.totalorder %s30, 0
      %p165 = por %p163, %p164
      %p166 = scmp.ne.s32.totalorder %s158, %s160
      %p167 = scmp.eq.s32.totalorder %s35, 1
      %p168 = por %p166, %p167
      %p169 = scmp.ne.s32.totalorder %s160, %s161
      %p170 = scmp.eq.s32.totalorder %s35, 0
      %p171 = por %p169, %p170
      %p172 = scmp.ne.s32.totalorder %s160, %s161
      %p173 = scmp.eq.s32.totalorder %s36, 1
      %p174 = por %p172, %p173
      %p176 = scmp.ne.s32.totalorder %s161, %s175
      %p177 = scmp.eq.s32.totalorder %s36, 0
      %p178 = por %p176, %p177
      %s180 = sadd.s32 %s179, 1
      %p183 = scmp.eq.s32.totalorder %s30, 1
      %p184 = scmp.ne.s32.totalorder %s179, %s181
      %p185 = scmp.eq.s32.totalorder %s30, 0
      %p186 = por %p184, %p185
      %p187 = scmp.ne.s32.totalorder %s179, %s181
      %p188 = scmp.eq.s32.totalorder %s35, 1
      %p189 = por %p187, %p188
      %p190 = scmp.ne.s32.totalorder %s181, %s182
      %p191 = scmp.eq.s32.totalorder %s35, 0
      %p192 = por %p190, %p191
      %p193 = scmp.ne.s32.totalorder %s181, %s182
      %p194 = scmp.eq.s32.totalorder %s36, 1
      %p195 = por %p193, %p194
      %p197 = scmp.ne.s32.totalorder %s182, %s196
      %p198 = scmp.eq.s32.totalorder %s36, 0
      %p199 = por %p197, %p198
      %s201 = sadd.s32 %s200, 1
      %p204 = scmp.eq.s32.totalorder %s30, 1
      %p205 = scmp.ne.s32.totalorder %s200, %s202
      %p206 = scmp.eq.s32.totalorder %s30, 0
      %p207 = por %p205, %p206
      %p208 = scmp.ne.s32.totalorder %s200, %s202
      %p209 = scmp.eq.s32.totalorder %s35, 1
      %p210 = por %p208, %p209
      %p211 = scmp.ne.s32.totalorder %s202, %s203
      %p212 = scmp.eq.s32.totalorder %s35, 0
      %p213 = por %p211, %p212
      %p214 = scmp.ne.s32.totalorder %s202, %s203
      %p215 = scmp.eq.s32.totalorder %s36, 1
      %p216 = por %p214, %p215
      %p218 = scmp.ne.s32.totalorder %s203, %s217
      %p219 = scmp.eq.s32.totalorder %s36, 0
      %p220 = por %p218, %p219
      %s221 = ssub.s32 %s30, %s37
      %p222 = scmp.eq.s32.totalorder %s221, 0
      %s224 = sadd.s32 %s223, 1
      %s225 = scalar_select %p222, %s223, %s224
      %p228 = pneg %p222
      %p229 = scmp.eq.s32.totalorder %s30, 1
      %p230 = por %p228, %p229
      %p231 = scmp.ne.s32.totalorder %s223, %s226
      %p232 = scmp.eq.s32.totalorder %s30, 0
      %p233 = por %p231, %p232
      %p234 = scmp.ne.s32.totalorder %s223, %s226
      %p235 = scmp.eq.s32.totalorder %s35, 1
      %p236 = por %p234, %p235
      %p237 = scmp.ne.s32.totalorder %s226, %s227
      %p238 = scmp.eq.s32.totalorder %s35, 0
      %p239 = por %p237, %p238
      %p240 = scmp.ne.s32.totalorder %s226, %s227
      %p241 = scmp.eq.s32.totalorder %s36, 1
      %p242 = por %p240, %p241
      %p244 = scmp.ne.s32.totalorder %s227, %s243
      %p245 = scmp.eq.s32.totalorder %s36, 0
      %p246 = por %p244, %p245
      %s247 = ssub.s32 %s30, %s37
      %p248 = scmp.eq.s32.totalorder %s247, 0
      %s250 = sadd.s32 %s249, 1
      %s251 = scalar_select %p248, %s249, %s250
      %p254 = pneg %p248
      %p255 = scmp.eq.s32.totalorder %s30, 1
      %p256 = por %p254, %p255
      %p257 = scmp.ne.s32.totalorder %s249, %s252
      %p258 = scmp.eq.s32.totalorder %s30, 0
      %p259 = por %p257, %p258
      %p260 = scmp.ne.s32.totalorder %s249, %s252
      %p261 = scmp.eq.s32.totalorder %s35, 1
      %p262 = por %p260, %p261
      %p263 = scmp.ne.s32.totalorder %s252, %s253
      %p264 = scmp.eq.s32.totalorder %s35, 0
      %p265 = por %p263, %p264
      %p266 = scmp.ne.s32.totalorder %s252, %s253
      %p267 = scmp.eq.s32.totalorder %s36, 1
      %p268 = por %p266, %p267
      %p270 = scmp.ne.s32.totalorder %s253, %s269
      %p271 = scmp.eq.s32.totalorder %s36, 0
      %p272 = por %p270, %p271
      %p273 = scmp.le.s32.totalorder 1, %s30
      %p274 = scmp.lt.s32.totalorder %s30, 3
      %p275 = pnand %p273, %p274
      %p276 = pneg %p275
      // Predicated region
      $region9: #{tpu_custom_call.1} parent=5 // pred_check
        _
      $region10: #{tpu_custom_call.1} parent=5 // pred_check_branch
        %278 = sbr.rel (%p275) target = $region12
      $region11: #{tpu_custom_call.1} parent=5 // pred_region
        %s279 = ssub.s32 %s30, 1
        // Predicated region
        $region13: #{tpu_custom_call.1} parent=11 // pred_check
          %p280 = pneg %p129
        $region14: #{tpu_custom_call.1} parent=11 // pred_check_branch
          %282 = sbr.rel (%p280) target = $region16
        $region15: #{tpu_custom_call.1} parent=11 // pred_region
          %s284 = ssub.s32 768, 768
          %285 = vsyncadd [#allocation9], %s284
          %s286 = sshll.u32 [#allocation8], 4
          %s287 = int_to_ptr.vmem [resolvable:$true] %s286
          %292 = dma.hbm_to_vmem [thread:$0]  %s3, 768, %s287, [#allocation9], 64, 64, 4
        $region16: #{tpu_custom_call.1} parent=11 // pred_fallthru
          _
        // Predicated region
        $region17: #{tpu_custom_call.1} parent=11 // pred_check
          %p293 = pneg %p150
        $region18: #{tpu_custom_call.1} parent=11 // pred_check_branch
          %295 = sbr.rel (%p293) target = $region20
        $region19: #{tpu_custom_call.1} parent=11 // pred_region
          _
        $region20: #{tpu_custom_call.1} parent=11 // pred_fallthru
          _
        // Predicated region
        $region21: #{tpu_custom_call.1} parent=11 // pred_check
          %p296 = pneg %p171
        $region22: #{tpu_custom_call.1} parent=11 // pred_check_branch
          %298 = sbr.rel (%p296) target = $region24
        $region23: #{tpu_custom_call.1} parent=11 // pred_region
          %s300 = ssub.s32 1024, 1024
          %301 = vsyncadd [#allocation9], %s300
          %s302 = sshll.u32 [#allocation10], 4
          %s303 = int_to_ptr.vmem [resolvable:$true] %s302
          %308 = dma.hbm_to_vmem [thread:$0]  %s5, 1024, %s303, [#allocation9], 256, 256, 16
        $region24: #{tpu_custom_call.1} parent=11 // pred_fallthru
          _
        // Predicated region
        $region25: #{tpu_custom_call.1} parent=11 // pred_check
          %p309 = pneg %p192
        $region26: #{tpu_custom_call.1} parent=11 // pred_check_branch
          %311 = sbr.rel (%p309) target = $region28
        $region27: #{tpu_custom_call.1} parent=11 // pred_region
          %s313 = ssub.s32 256, 256
          %314 = vsyncadd [#allocation12], %s313
          %s315 = sshll.u32 [#allocation11], 4
          %s316 = int_to_ptr.vmem [resolvable:$true] %s315
          %321 = dma.hbm_to_vmem [thread:$0]  %s6, 256, %s316, [#allocation12], 64, 64, 4
        $region28: #{tpu_custom_call.1} parent=11 // pred_fallthru
          _
        // Predicated region
        $region29: #{tpu_custom_call.1} parent=11 // pred_check
          %p322 = pneg %p213
        $region30: #{tpu_custom_call.1} parent=11 // pred_check_branch
          %324 = sbr.rel (%p322) target = $region32
        $region31: #{tpu_custom_call.1} parent=11 // pred_region
          _
        $region32: #{tpu_custom_call.1} parent=11 // pred_fallthru
          _
      $region12: #{tpu_custom_call.1} parent=5 // pred_fallthru
        _
      %p325 = scmp.lt.s32.totalorder %s30, 2
      // Predicated region
      $region33: #{tpu_custom_call.1} parent=5 // pred_check
        %p326 = pneg %p325
      $region34: #{tpu_custom_call.1} parent=5 // pred_check_branch
        %328 = sbr.rel (%p326) target = $region36
      $region35: #{tpu_custom_call.1} parent=5 // pred_region
        // Predicated region
        $region37: #{tpu_custom_call.1} parent=35 // pred_check
          %p329 = pneg %p50
        $region38: #{tpu_custom_call.1} parent=35 // pred_check_branch
          %331 = sbr.rel (%p329) target = $region40
        $region39: #{tpu_custom_call.1} parent=35 // pred_region
          %s332 = sand.u32 %s40, 1
          %s333 = scalar_lea.sflag [#allocation3], %s332
          %s334 = sand.u32 %s40, 1
          %s335 = smul.addr %s334, 8
          %s336 = scalar_lea.vmem [#allocation2], %s335
          %s338 = ssub.s32 128, 128
          %339 = vsyncadd %s333, %s338
          %s340 = smul.addr %s30, 128
          %s341 = scalar_lea.hbm %s0, %s340
          %s343 = sshll.u32 %s336, 4
          %s344 = int_to_ptr.vmem [resolvable:$true] %s343
          %346 = dma.hbm_to_vmem [thread:$0]  %s341, 128, %s344, %s333
        $region40: #{tpu_custom_call.1} parent=35 // pred_fallthru
          _
        // Predicated region
        $region41: #{tpu_custom_call.1} parent=35 // pred_check
          %p347 = pneg %p76
        $region42: #{tpu_custom_call.1} parent=35 // pred_check_branch
          %349 = sbr.rel (%p347) target = $region44
        $region43: #{tpu_custom_call.1} parent=35 // pred_region
          %s350 = sand.u32 %s30, 1
          %s351 = scalar_lea.sflag [#allocation6], %s350
          %s352 = sand.u32 %s66, 1
          %s353 = smul.addr %s352, 8
          %s354 = scalar_lea.vmem [#allocation5], %s353
          %s356 = ssub.s32 128, 128
          %357 = vsyncadd %s351, %s356
          %s358 = smul.addr %s30, 128
          %s359 = scalar_lea.hbm %s1, %s358
          %s361 = sshll.u32 %s354, 4
          %s362 = int_to_ptr.vmem [resolvable:$true] %s361
          %364 = dma.hbm_to_vmem [thread:$0]  %s359, 128, %s362, %s351
        $region44: #{tpu_custom_call.1} parent=35 // pred_fallthru
          _
        // Predicated region
        $region45: #{tpu_custom_call.1} parent=35 // pred_check
          %p365 = pneg %p102
        $region46: #{tpu_custom_call.1} parent=35 // pred_check_branch
          %367 = sbr.rel (%p365) target = $region48
        $region47: #{tpu_custom_call.1} parent=35 // pred_region
          %s368 = sand.u32 %s30, 1
          %s369 = scalar_lea.sflag [#allocation6], %s368
          %s370 = sand.u32 %s92, 1
          %s371 = smul.addr %s370, 8
          %s372 = scalar_lea.vmem [#allocation7], %s371
          %s374 = ssub.s32 128, 128
          %375 = vsyncadd %s369, %s374
          %s376 = smul.addr %s30, 128
          %s377 = scalar_lea.hbm %s2, %s376
          %s379 = sshll.u32 %s372, 4
          %s380 = int_to_ptr.vmem [resolvable:$true] %s379
          %382 = dma.hbm_to_vmem [thread:$0]  %s377, 128, %s380, %s369
        $region48: #{tpu_custom_call.1} parent=35 // pred_fallthru
          _
      $region36: #{tpu_custom_call.1} parent=5 // pred_fallthru
        _
      %p383 = scmp.le.s32.totalorder 1, %s30
      %p384 = scmp.lt.s32.totalorder %s30, 3
      %p385 = pnand %p383, %p384
      %p386 = pneg %p385
      // Predicated region
      $region49: #{tpu_custom_call.1} parent=5 // pred_check
        _
      $region50: #{tpu_custom_call.1} parent=5 // pred_check_branch
        %388 = sbr.rel (%p385) target = $region52
      $region51: #{tpu_custom_call.1} parent=5 // pred_region
        %s389 = ssub.s32 %s30, 1
        %s390 = sand.u32 %s43, 1
        %s391 = scalar_lea.sflag [#allocation3], %s390
        %s392 = sand.u32 %s43, 1
        %s393 = smul.addr %s392, 8
        %s394 = scalar_lea.vmem [#allocation2], %s393
        // Predicated region
        $region53: #{tpu_custom_call.1} parent=51 // pred_check
          %p395 = pneg %p56
        $region54: #{tpu_custom_call.1} parent=51 // pred_check_branch
          %397 = sbr.rel (%p395) target = $region56
        $region55: #{tpu_custom_call.1} parent=51 // pred_region
          %398 = dma.done %s391, 128
        $region56: #{tpu_custom_call.1} parent=51 // pred_fallthru
          _
        %s399 = sand.u32 %s35, 1
        %s400 = scalar_lea.sflag [#allocation6], %s399
        %s401 = sand.u32 %s69, 1
        %s402 = smul.addr %s401, 8
        %s403 = scalar_lea.vmem [#allocation5], %s402
        // Predicated region
        $region57: #{tpu_custom_call.1} parent=51 // pred_check
          %p404 = pneg %p82
        $region58: #{tpu_custom_call.1} parent=51 // pred_check_branch
          %406 = sbr.rel (%p404) target = $region60
        $region59: #{tpu_custom_call.1} parent=51 // pred_region
          %407 = dma.done %s400, 128
        $region60: #{tpu_custom_call.1} parent=51 // pred_fallthru
          _
        %s408 = sand.u32 %s35, 1
        %s409 = scalar_lea.sflag [#allocation6], %s408
        %s410 = sand.u32 %s95, 1
        %s411 = smul.addr %s410, 8
        %s412 = scalar_lea.vmem [#allocation7], %s411
        // Predicated region
        $region61: #{tpu_custom_call.1} parent=51 // pred_check
          %p413 = pneg %p108
        $region62: #{tpu_custom_call.1} parent=51 // pred_check_branch
          %415 = sbr.rel (%p413) target = $region64
        $region63: #{tpu_custom_call.1} parent=51 // pred_region
          %416 = dma.done %s409, 128
        $region64: #{tpu_custom_call.1} parent=51 // pred_fallthru
          _
        // Predicated region
        $region65: #{tpu_custom_call.1} parent=51 // pred_check
          %p417 = pneg %p129
        $region66: #{tpu_custom_call.1} parent=51 // pred_check_branch
          %419 = sbr.rel (%p417) target = $region68
        $region67: #{tpu_custom_call.1} parent=51 // pred_region
          %420 = dma.done [#allocation9], 768
        $region68: #{tpu_custom_call.1} parent=51 // pred_fallthru
          _
        // Predicated region
        $region69: #{tpu_custom_call.1} parent=51 // pred_check
          %p421 = pneg %p171
        $region70: #{tpu_custom_call.1} parent=51 // pred_check_branch
          %423 = sbr.rel (%p421) target = $region72
        $region71: #{tpu_custom_call.1} parent=51 // pred_region
          %424 = dma.done [#allocation9], 1024
        $region72: #{tpu_custom_call.1} parent=51 // pred_fallthru
          _
        // Predicated region
        $region73: #{tpu_custom_call.1} parent=51 // pred_check
          %p425 = pneg %p192
        $region74: #{tpu_custom_call.1} parent=51 // pred_check_branch
          %427 = sbr.rel (%p425) target = $region76
        $region75: #{tpu_custom_call.1} parent=51 // pred_region
          %428 = dma.done [#allocation12], 256
        $region76: #{tpu_custom_call.1} parent=51 // pred_fallthru
          _
        %s429 = sand.u32 %s43, 1
        %s430 = scalar_lea.sflag [#allocation3], %s429
        %s431 = sand.u32 %s43, 1
        %s432 = smul.addr %s431, 8
        %s433 = scalar_lea.vmem [#allocation2], %s432
        %p434 = pneg %p56
        %p435 = pneg %p53
        %s436 = sand.u32 %s35, 1
        %s437 = scalar_lea.sflag [#allocation6], %s436
        %s438 = sand.u32 %s69, 1
        %s439 = smul.addr %s438, 8
        %s440 = scalar_lea.vmem [#allocation5], %s439
        %p441 = pneg %p82
        %p442 = pneg %p79
        %s443 = sand.u32 %s35, 1
        %s444 = scalar_lea.sflag [#allocation6], %s443
        %s445 = sand.u32 %s95, 1
        %s446 = smul.addr %s445, 8
        %s447 = scalar_lea.vmem [#allocation7], %s446
        %p448 = pneg %p108
        %p449 = pneg %p105
        %p450 = pneg %p129
        %p451 = pneg %p126
        %p452 = pneg %p150
        %p453 = pneg %p147
        %p454 = pneg %p171
        %p455 = pneg %p168
        %p456 = pneg %p192
        %p457 = pneg %p189
        %p458 = pneg %p213
        %p459 = pneg %p210
        %p460 = pneg %p239
        %p461 = pneg %p236
        %s462 = sand.u32 %s226, 1
        %s463 = scalar_lea.sflag [#allocation4], %s462
        %s464 = sand.u32 %s226, 1
        %s465 = smul.addr %s464, 8
        %s466 = scalar_lea.vmem [#allocation13], %s465
        %p467 = pneg %p265
        %p468 = pneg %p262
        %s469 = sand.u32 %s252, 1
        %s470 = scalar_lea.sflag [#allocation15], %s469
        %s471 = sand.u32 %s252, 1
        %s472 = smul.addr %s471, 32
        %s473 = scalar_lea.vmem [#allocation14], %s472
        %v475 = vld [vmem:[#allocation8] sm:$0xf]
        %v476 = vld [vmem:[#allocation8 + $0x4] sm:$0xf]
        %v477 = vld [vmem:[#allocation8 + $0x8] sm:$0xf]
        %v478 = vld [vmem:[#allocation8 + $0xc] sm:$0xf]
        %v479 = vld [vmem:[#allocation8 + $0x10] sm:$0xf]
        %v480 = vld [vmem:[#allocation8 + $0x14] sm:$0xf]
        %v481 = vld [vmem:[#allocation8 + $0x18] sm:$0xf]
        %v482 = vld [vmem:[#allocation8 + $0x1c] sm:$0xf]
        %v483 = vld [vmem:[#allocation8 + $0x20] sm:$0xf]
        %v484 = vld [vmem:[#allocation8 + $0x24] sm:$0xf]
        %v485 = vld [vmem:[#allocation8 + $0x28] sm:$0xf]
        %v486 = vld [vmem:[#allocation8 + $0x2c] sm:$0xf]
        %v487 = vld [vmem:[%s4] sm:$0x1]
        %v488 = vld [vmem:[%s4 + $0x1] sm:$0x1]
        %v489 = vld [vmem:[%s4 + $0x2] sm:$0x1]
        %v490 = vld [vmem:[%s394] sm:$0xff]
        %v491 = vpack.c.bf16 %v490, %v490
        %v493 = vlaneseq
        %v494 = vshrl.u32 %v493, 7
        %v495 = vsub.s32 0, %v494
        %v496 = vrot.slane %v487, %v495
        %v502 = vunpack.c.l.b16 %v475
        %v503 = vunpack.c.l.b16 %v476
        %v504 = vunpack.c.l.b16 %v477
        %v505 = vunpack.c.l.b16 %v478
        %v506 = vpack.c.b16 %v503, %v502
        %v507 = vpack.c.b16 %v505, %v504
        %vm510 = vcmask 261120
        %v512 = vsel %vm510, %v491, 0
        %514 = vmatprep.subr.bf16.mxu0 0
        %515 = vmatpush1.bf16.msra.mxu0 0
        %516 = vmatprep.subr.bf16.mxu0 0
        %517 = vmatpush1.bf16.msra.mxu0 0
        %518 = vmatprep.subr.bf16.mxu0 0
        %519 = vmatpush1.bf16.msra.mxu0 0
        %520 = vmatprep.subr.bf16.mxu0 0
        %521 = vmatpush1.bf16.msra.mxu0 0
        %522 = vmatprep.subr.bf16.mxu0 0
        %523 = vmatpush1.bf16.msra.mxu0 0
        %524 = vmatprep.subr.bf16.mxu0 0
        %525 = vmatpush1.bf16.msra.mxu0 0
        %526 = vmatprep.subr.bf16.mxu0 0
        %527 = vmatpush1.bf16.msra.mxu0 %v507
        %528 = vmatprep.subr.bf16.mxu0 0
        %529 = vmatpush1.bf16.msra.mxu0 %v506
        %530 = vmatprep.subr.bf16.mxu0 0
        %531 = vmatpush2.bf16.msra.mxu0 0
        %532 = vmatprep.subr.bf16.mxu0 0
        %533 = vmatpush2.bf16.msra.mxu0 0
        %534 = vmatprep.subr.bf16.mxu0 0
        %535 = vmatpush2.bf16.msra.mxu0 0
        %536 = vmatprep.subr.bf16.mxu0 0
        %537 = vmatpush2.bf16.msra.mxu0 0
        %538 = vmatprep.subr.bf16.mxu0 0
        %539 = vmatpush2.bf16.msra.mxu0 0
        %540 = vmatprep.subr.bf16.mxu0 0
        %541 = vmatpush2.bf16.msra.mxu0 0
        %542 = vmatprep.subr.bf16.mxu0 0
        %543 = vmatpush2.bf16.msra.mxu0 0
        %544 = vmatprep.subr.bf16.mxu0 0
        %545 = vmatpush2.bf16.msra.mxu0 0
        %546 = vmatprep.mubr.bf16.mxu0 0
        %547 = vmatmul.mubr.bf16.gmra.mxu0 %v512
        %v548 = vpop.f32.mrf.mxu0
        %v549 = vadd.f32 %v496, %v548
        %v550 = vpop.f32.mrf.mxu0
        %v551 = vpop.f32.mrf.mxu0
        %v552 = vpop.f32.mrf.mxu0
        %553 = vdwg.mxu0
        %v554 = vmul.f32 %v549, 0.35355338
        %v555 = vld [vmem:[%s403] sm:$0xff]
        %v556 = vpack.c.bf16 %v555, %v555
        %v558 = vlaneseq
        %v559 = vshrl.u32 %v558, 7
        %v560 = vsub.s32 0, %v559
        %v561 = vrot.slane %v488, %v560
        %v567 = vunpack.c.l.b16 %v479
        %v568 = vunpack.c.l.b16 %v480
        %v569 = vunpack.c.l.b16 %v481
        %v570 = vunpack.c.l.b16 %v482
        %v571 = vpack.c.b16 %v568, %v567
        %v572 = vpack.c.b16 %v570, %v569
        %v576 = vsel %vm510, %v556, 0
        %578 = vmatprep.subr.bf16.mxu0 0
        %579 = vmatpush1.bf16.msra.mxu0 0
        %580 = vmatprep.subr.bf16.mxu0 0
        %581 = vmatpush1.bf16.msra.mxu0 0
        %582 = vmatprep.subr.bf16.mxu0 0
        %583 = vmatpush1.bf16.msra.mxu0 0
        %584 = vmatprep.subr.bf16.mxu0 0
        %585 = vmatpush1.bf16.msra.mxu0 0
        %586 = vmatprep.subr.bf16.mxu0 0
        %587 = vmatpush1.bf16.msra.mxu0 0
        %588 = vmatprep.subr.bf16.mxu0 0
        %589 = vmatpush1.bf16.msra.mxu0 0
        %590 = vmatprep.subr.bf16.mxu0 0
        %591 = vmatpush1.bf16.msra.mxu0 %v572
        %592 = vmatprep.subr.bf16.mxu0 0
        %593 = vmatpush1.bf16.msra.mxu0 %v571
        %594 = vmatprep.subr.bf16.mxu0 0
        %595 = vmatpush2.bf16.msra.mxu0 0
        %596 = vmatprep.subr.bf16.mxu0 0
        %597 = vmatpush2.bf16.msra.mxu0 0
        %598 = vmatprep.subr.bf16.mxu0 0
        %599 = vmatpush2.bf16.msra.mxu0 0
        %600 = vmatprep.subr.bf16.mxu0 0
        %601 = vmatpush2.bf16.msra.mxu0 0
        %602 = vmatprep.subr.bf16.mxu0 0
        %603 = vmatpush2.bf16.msra.mxu0 0
        %604 = vmatprep.subr.bf16.mxu0 0
        %605 = vmatpush2.bf16.msra.mxu0 0
        %606 = vmatprep.subr.bf16.mxu0 0
        %607 = vmatpush2.bf16.msra.mxu0 0
        %608 = vmatprep.subr.bf16.mxu0 0
        %609 = vmatpush2.bf16.msra.mxu0 0
        %610 = vmatprep.mubr.bf16.mxu0 0
        %611 = vmatmul.mubr.bf16.gmra.mxu0 %v576
        %v612 = vpop.f32.mrf.mxu0
        %v613 = vadd.f32 %v561, %v612
        %v614 = vpop.f32.mrf.mxu0
        %v615 = vpop.f32.mrf.mxu0
        %v616 = vpop.f32.mrf.mxu0
        %617 = vdwg.mxu0
        %v618 = vld [vmem:[%s412] sm:$0xff]
        %v619 = vpack.c.bf16 %v618, %v618
        %v621 = vlaneseq
        %v622 = vshrl.u32 %v621, 7
        %v623 = vsub.s32 0, %v622
        %v624 = vrot.slane %v489, %v623
        %v630 = vunpack.c.l.b16 %v483
        %v631 = vunpack.c.l.b16 %v484
        %v632 = vunpack.c.l.b16 %v485
        %v633 = vunpack.c.l.b16 %v486
        %v634 = vpack.c.b16 %v631, %v630
        %v635 = vpack.c.b16 %v633, %v632
        %v639 = vsel %vm510, %v619, 0
        %641 = vmatprep.subr.bf16.mxu0 0
        %642 = vmatpush1.bf16.msra.mxu0 0
        %643 = vmatprep.subr.bf16.mxu0 0
        %644 = vmatpush1.bf16.msra.mxu0 0
        %645 = vmatprep.subr.bf16.mxu0 0
        %646 = vmatpush1.bf16.msra.mxu0 0
        %647 = vmatprep.subr.bf16.mxu0 0
        %648 = vmatpush1.bf16.msra.mxu0 0
        %649 = vmatprep.subr.bf16.mxu0 0
        %650 = vmatpush1.bf16.msra.mxu0 0
        %651 = vmatprep.subr.bf16.mxu0 0
        %652 = vmatpush1.bf16.msra.mxu0 0
        %653 = vmatprep.subr.bf16.mxu0 0
        %654 = vmatpush1.bf16.msra.mxu0 %v635
        %655 = vmatprep.subr.bf16.mxu0 0
        %656 = vmatpush1.bf16.msra.mxu0 %v634
        %657 = vmatprep.subr.bf16.mxu0 0
        %658 = vmatpush2.bf16.msra.mxu0 0
        %659 = vmatprep.subr.bf16.mxu0 0
        %660 = vmatpush2.bf16.msra.mxu0 0
        %661 = vmatprep.subr.bf16.mxu0 0
        %662 = vmatpush2.bf16.msra.mxu0 0
        %663 = vmatprep.subr.bf16.mxu0 0
        %664 = vmatpush2.bf16.msra.mxu0 0
        %665 = vmatprep.subr.bf16.mxu0 0
        %666 = vmatpush2.bf16.msra.mxu0 0
        %667 = vmatprep.subr.bf16.mxu0 0
        %668 = vmatpush2.bf16.msra.mxu0 0
        %669 = vmatprep.subr.bf16.mxu0 0
        %670 = vmatpush2.bf16.msra.mxu0 0
        %671 = vmatprep.subr.bf16.mxu0 0
        %672 = vmatpush2.bf16.msra.mxu0 0
        %673 = vmatprep.mubr.bf16.mxu0 0
        %674 = vmatmul.mubr.bf16.gmra.mxu0 %v639
        %v675 = vpop.f32.mrf.mxu0
        %v676 = vadd.f32 %v624, %v675
        %v677 = vpop.f32.mrf.mxu0
        %v678 = vpop.f32.mrf.mxu0
        %v679 = vpop.f32.mrf.mxu0
        %680 = vdwg.mxu0
        %v681 = vpack.c.bf16 %v554, %v554
        %v682 = vpack.c.bf16 %v613, %v613
        %v683 = vpack.c.bf16 %v676, %v676
        %v684 = vld [vmem:[#allocation10] sm:$0xff]
        %v685 = vld [vmem:[#allocation10 + $0x8] sm:$0xff]
        %v686 = vld [vmem:[#allocation10 + $0x10] sm:$0xff]
        %v687 = vld [vmem:[#allocation10 + $0x18] sm:$0xff]
        %v688 = vld [vmem:[#allocation10 + $0x20] sm:$0xff]
        %v689 = vld [vmem:[#allocation10 + $0x28] sm:$0xff]
        %v690 = vld [vmem:[#allocation10 + $0x30] sm:$0xff]
        %v691 = vld [vmem:[#allocation10 + $0x38] sm:$0xff]
        %v700 = vunpack.c.l.b16 %v684
        %v701 = vunpack.c.h.b16 %v684
        %v702 = vunpack.c.l.b16 %v685
        %v703 = vunpack.c.h.b16 %v685
        %v704 = vunpack.c.l.b16 %v686
        %v705 = vunpack.c.h.b16 %v686
        %v706 = vunpack.c.l.b16 %v687
        %v707 = vunpack.c.h.b16 %v687
        %v708 = vunpack.c.l.b16 %v688
        %v709 = vunpack.c.h.b16 %v688
        %v710 = vunpack.c.l.b16 %v689
        %v711 = vunpack.c.h.b16 %v689
        %v712 = vunpack.c.l.b16 %v690
        %v713 = vunpack.c.h.b16 %v690
        %v714 = vunpack.c.l.b16 %v691
        %v715 = vunpack.c.h.b16 %v691
        %v716 = vpack.c.b16 %v704, %v700
        %v717 = vpack.c.b16 %v705, %v701
        %v718 = vpack.c.b16 %v706, %v702
        %v719 = vpack.c.b16 %v707, %v703
        %v720 = vpack.c.b16 %v712, %v708
        %v721 = vpack.c.b16 %v713, %v709
        %v722 = vpack.c.b16 %v714, %v710
        %v723 = vpack.c.b16 %v715, %v711
        %v733 = vsel %vm510, %v681, 0
        %735 = vmatprep.subr.bf16.mxu0 0
        %736 = vmatpush1.bf16.msra.mxu0 0
        %737 = vmatprep.subr.bf16.mxu0 0
        %738 = vmatpush1.bf16.msra.mxu0 0
        %739 = vmatprep.subr.bf16.mxu0 0
        %740 = vmatpush1.bf16.msra.mxu0 0
        %741 = vmatprep.subr.bf16.mxu0 0
        %742 = vmatpush1.bf16.msra.mxu0 0
        %743 = vmatprep.subr.bf16.mxu0 0
        %744 = vmatpush1.bf16.msra.mxu0 0
        %745 = vmatprep.subr.bf16.mxu0 0
        %746 = vmatpush1.bf16.msra.mxu0 0
        %747 = vmatprep.subr.bf16.mxu0 %v721
        %748 = vmatpush1.bf16.msra.mxu0 %v720
        %749 = vmatprep.subr.bf16.mxu0 %v717
        %750 = vmatpush1.bf16.msra.mxu0 %v716
        %751 = vmatprep.subr.bf16.mxu0 0
        %752 = vmatpush2.bf16.msra.mxu0 0
        %753 = vmatprep.subr.bf16.mxu0 0
        %754 = vmatpush2.bf16.msra.mxu0 0
        %755 = vmatprep.subr.bf16.mxu0 0
        %756 = vmatpush2.bf16.msra.mxu0 0
        %757 = vmatprep.subr.bf16.mxu0 0
        %758 = vmatpush2.bf16.msra.mxu0 0
        %759 = vmatprep.subr.bf16.mxu0 0
        %760 = vmatpush2.bf16.msra.mxu0 0
        %761 = vmatprep.subr.bf16.mxu0 0
        %762 = vmatpush2.bf16.msra.mxu0 0
        %763 = vmatprep.subr.bf16.mxu0 0
        %764 = vmatpush2.bf16.msra.mxu0 0
        %765 = vmatprep.subr.bf16.mxu0 0
        %766 = vmatpush2.bf16.msra.mxu0 0
        %767 = vmatprep.mubr.bf16.mxu0 0
        %768 = vmatmul.mubr.bf16.gmra.mxu0 %v733
        %v769 = vpop.f32.mrf.mxu0
        %v770 = vadd.f32 0.0, %v769
        %v771 = vpop.f32.mrf.mxu0
        %v772 = vadd.f32 0.0, %v771
        %v773 = vpop.f32.mrf.mxu0
        %v774 = vpop.f32.mrf.mxu0
        %775 = vdwg.mxu0
        %776 = vmatprep.subr.bf16.mxu0 0
        %777 = vmatpush1.bf16.msra.mxu0 0
        %778 = vmatprep.subr.bf16.mxu0 0
        %779 = vmatpush1.bf16.msra.mxu0 0
        %780 = vmatprep.subr.bf16.mxu0 0
        %781 = vmatpush1.bf16.msra.mxu0 0
        %782 = vmatprep.subr.bf16.mxu0 0
        %783 = vmatpush1.bf16.msra.mxu0 0
        %784 = vmatprep.subr.bf16.mxu0 0
        %785 = vmatpush1.bf16.msra.mxu0 0
        %786 = vmatprep.subr.bf16.mxu0 0
        %787 = vmatpush1.bf16.msra.mxu0 0
        %788 = vmatprep.subr.bf16.mxu0 %v723
        %789 = vmatpush1.bf16.msra.mxu0 %v722
        %790 = vmatprep.subr.bf16.mxu0 %v719
        %791 = vmatpush1.bf16.msra.mxu0 %v718
        %792 = vmatprep.subr.bf16.mxu0 0
        %793 = vmatpush2.bf16.msra.mxu0 0
        %794 = vmatprep.subr.bf16.mxu0 0
        %795 = vmatpush2.bf16.msra.mxu0 0
        %796 = vmatprep.subr.bf16.mxu0 0
        %797 = vmatpush2.bf16.msra.mxu0 0
        %798 = vmatprep.subr.bf16.mxu0 0
        %799 = vmatpush2.bf16.msra.mxu0 0
        %800 = vmatprep.subr.bf16.mxu0 0
        %801 = vmatpush2.bf16.msra.mxu0 0
        %802 = vmatprep.subr.bf16.mxu0 0
        %803 = vmatpush2.bf16.msra.mxu0 0
        %804 = vmatprep.subr.bf16.mxu0 0
        %805 = vmatpush2.bf16.msra.mxu0 0
        %806 = vmatprep.subr.bf16.mxu0 0
        %807 = vmatpush2.bf16.msra.mxu0 0
        %808 = vmatprep.mubr.bf16.mxu0 0
        %809 = vmatmul.mubr.bf16.gmra.mxu0 %v733
        %v810 = vpop.f32.mrf.mxu0
        %v811 = vadd.f32 0.0, %v810
        %v812 = vpop.f32.mrf.mxu0
        %v813 = vadd.f32 0.0, %v812
        %v814 = vpop.f32.mrf.mxu0
        %v815 = vpop.f32.mrf.mxu0
        %816 = vdwg.mxu0
        %v817 = vlaneseq
        %v818 = vshrl.u32 %v817, 7
        %v819 = vlaneseq
        %v820 = vand.u32 %v819, 127
        %v821 = vadd.s32 %v820, 128
        %v822 = vadd.s32 %v820, 256
        %v823 = vadd.s32 %v820, 384
        %v824 = vand.u32 %v820, 127
        %v825 = vand.u32 %v821, 127
        %v826 = vand.u32 %v822, 127
        %v827 = vand.u32 %v823, 127
        %v828 = vsub.s32 127, %v818
        %vm829 = vcmp.ge.s32.totalorder %v824, %v828
        %vm830 = vcmp.ge.s32.totalorder %v825, %v828
        %vm831 = vcmp.ge.s32.totalorder %v826, %v828
        %vm832 = vcmp.ge.s32.totalorder %v827, %v828
        %v833 = vsel %vm829, %v770, 0.0
        %v834 = vsel %vm830, %v772, 0.0
        %v835 = vsel %vm831, %v811, 0.0
        %v836 = vsel %vm832, %v813, 0.0
        %v837 = vadd.s32 %v818, 1
        %839 = vrot.lane.b32.xlu0 %v833, 1
        %v840 = vpop.permute.xlu0 %839
        %v842 = vand.u32 %v837, 1
        %vm843 = vcmp.ne.s32.totalorder %v842, 0
        %v844 = vsel %vm843, %v840, %v833
        %846 = vrot.lane.b32.xlu0 %v844, 2
        %v847 = vpop.permute.xlu0 %846
        %v849 = vand.u32 %v837, 2
        %vm850 = vcmp.ne.s32.totalorder %v849, 0
        %v851 = vsel %vm850, %v847, %v844
        %853 = vrot.lane.b32.xlu0 %v851, 4
        %v854 = vpop.permute.xlu0 %853
        %v856 = vand.u32 %v837, 4
        %vm857 = vcmp.ne.s32.totalorder %v856, 0
        %v858 = vsel %vm857, %v854, %v851
        %860 = vrot.lane.b32.xlu0 %v858, 8
        %v861 = vpop.permute.xlu0 %860
        %vm863 = vcmask 64512
        %v864 = vand.u32 %v837, 8
        %vm865 = vcmp.ne.s32.totalorder %v864, 0
        %v866 = vsel %vm865, %v861, %v858
        %868 = vrot.lane.b32.xlu0 %v866, 16
        %v869 = vpop.permute.xlu0 %868
        %vm871 = vcmask 130048
        %v872 = vand.u32 %v837, 16
        %vm873 = vcmp.ne.s32.totalorder %v872, 0
        %v874 = vsel %vm873, %v869, %v866
        %876 = vrot.lane.b32.xlu0 %v874, 32
        %v877 = vpop.permute.xlu0 %876
        %v879 = vand.u32 %v837, 32
        %vm880 = vcmp.ne.s32.totalorder %v879, 0
        %v881 = vsel %vm880, %v877, %v874
        %883 = vrot.lane.b32.xlu0 %v881, 64
        %v884 = vpop.permute.xlu0 %883
        %v886 = vand.u32 %v837, 64
        %vm887 = vcmp.ne.s32.totalorder %v886, 0
        %v888 = vsel %vm887, %v884, %v881
        %v889 = vsel %vm863, %v681, 0
        %v892 = vsel %vm863, %v682, 0
        %894 = vmatprep.subr.bf16.mxu0 0
        %895 = vmatpush1.bf16.xpose.msra.mxu0 0
        %896 = vmatprep.subr.bf16.mxu0 0
        %897 = vmatpush1.bf16.xpose.msra.mxu0 0
        %898 = vmatprep.subr.bf16.mxu0 0
        %899 = vmatpush1.bf16.xpose.msra.mxu0 0
        %900 = vmatprep.subr.bf16.mxu0 0
        %901 = vmatpush1.bf16.xpose.msra.mxu0 0
        %902 = vmatprep.subr.bf16.mxu0 0
        %903 = vmatpush1.bf16.xpose.msra.mxu0 0
        %904 = vmatprep.subr.bf16.mxu0 0
        %905 = vmatpush1.bf16.xpose.msra.mxu0 0
        %906 = vmatprep.subr.bf16.mxu0 0
        %907 = vmatpush1.bf16.xpose.msra.mxu0 0
        %908 = vmatprep.subr.bf16.mxu0 0
        %909 = vmatpush1.bf16.xpose.msra.mxu0 %v892
        %910 = vmatprep.subr.bf16.mxu0 0
        %911 = vmatpush2.bf16.xpose.msra.mxu0 0
        %912 = vmatprep.subr.bf16.mxu0 0
        %913 = vmatpush2.bf16.xpose.msra.mxu0 0
        %914 = vmatprep.subr.bf16.mxu0 0
        %915 = vmatpush2.bf16.xpose.msra.mxu0 0
        %916 = vmatprep.subr.bf16.mxu0 0
        %917 = vmatpush2.bf16.xpose.msra.mxu0 0
        %918 = vmatprep.subr.bf16.mxu0 0
        %919 = vmatpush2.bf16.xpose.msra.mxu0 0
        %920 = vmatprep.subr.bf16.mxu0 0
        %921 = vmatpush2.bf16.xpose.msra.mxu0 0
        %922 = vmatprep.subr.bf16.mxu0 0
        %923 = vmatpush2.bf16.xpose.msra.mxu0 0
        %924 = vmatprep.subr.bf16.mxu0 0
        %925 = vmatpush2.bf16.xpose.msra.mxu0 0
        %926 = vmatprep.mubr.bf16.mxu0 0
        %927 = vmatmul.mubr.bf16.gmra.mxu0 %v889
        %v928 = vpop.f32.mrf.mxu0
        %v929 = vadd.f32 %v888, %v928
        %v930 = vpop.f32.mrf.mxu0
        %v931 = vpop.f32.mrf.mxu0
        %v932 = vpop.f32.mrf.mxu0
        %933 = vdwg.mxu0
        %v934 = vsel %vm863, %v929, -inf
        %935 = vmax.xlane.f32.xlu0 %v934
        %v936 = vpop.xlane.xlu0 %935
        %v937 = vsub.f32 %v929, %v936
        %v938 = vmul.f32 %v937, 1.442695
        %v939 = vpow.pop %v938
        %v940 = vsel %vm863, %v939, 0.0
        %941 = vadd.xlane.f32.xlu0 %v940
        %v942 = vpop.xlane.xlu0 %941
        %v943 = vrcp.pop %v942
        %v944 = vmul.f32 %v939, %v943
        %v945 = vpack.c.bf16 %v944, %v944
        %v947 = vsel %vm863, %v945, 0
        %vm949 = vcmask 1043456
        %v951 = vsel %vm949, %v683, 0
        %953 = vmatprep.subr.bf16.mxu0 0
        %954 = vmatpush1.bf16.msra.mxu0 0
        %955 = vmatprep.subr.bf16.mxu0 0
        %956 = vmatpush1.bf16.msra.mxu0 0
        %957 = vmatprep.subr.bf16.mxu0 0
        %958 = vmatpush1.bf16.msra.mxu0 0
        %959 = vmatprep.subr.bf16.mxu0 0
        %960 = vmatpush1.bf16.msra.mxu0 0
        %961 = vmatprep.subr.bf16.mxu0 0
        %962 = vmatpush1.bf16.msra.mxu0 0
        %963 = vmatprep.subr.bf16.mxu0 0
        %964 = vmatpush1.bf16.msra.mxu0 0
        %965 = vmatprep.subr.bf16.mxu0 0
        %966 = vmatpush1.bf16.msra.mxu0 0
        %967 = vmatprep.subr.bf16.mxu0 0
        %968 = vmatpush1.bf16.msra.mxu0 %v951
        %969 = vmatprep.subr.bf16.mxu0 0
        %970 = vmatpush2.bf16.msra.mxu0 0
        %971 = vmatprep.subr.bf16.mxu0 0
        %972 = vmatpush2.bf16.msra.mxu0 0
        %973 = vmatprep.subr.bf16.mxu0 0
        %974 = vmatpush2.bf16.msra.mxu0 0
        %975 = vmatprep.subr.bf16.mxu0 0
        %976 = vmatpush2.bf16.msra.mxu0 0
        %977 = vmatprep.subr.bf16.mxu0 0
        %978 = vmatpush2.bf16.msra.mxu0 0
        %979 = vmatprep.subr.bf16.mxu0 0
        %980 = vmatpush2.bf16.msra.mxu0 0
        %981 = vmatprep.subr.bf16.mxu0 0
        %982 = vmatpush2.bf16.msra.mxu0 0
        %983 = vmatprep.subr.bf16.mxu0 0
        %984 = vmatpush2.bf16.msra.mxu0 0
        %985 = vmatprep.mubr.bf16.mxu0 0
        %986 = vmatmul.mubr.bf16.gmra.mxu0 %v947
        %v987 = vpop.f32.mrf.mxu0
        %v988 = vadd.f32 0.0, %v987
        %v989 = vpop.f32.mrf.mxu0
        %v990 = vpop.f32.mrf.mxu0
        %v991 = vpop.f32.mrf.mxu0
        %992 = vdwg.mxu0
        %994 = vrot.lane.b32.xlu0 %v834, 1
        %v995 = vpop.permute.xlu0 %994
        %v997 = vsel %vm843, %v995, %v834
        %999 = vrot.lane.b32.xlu0 %v997, 2
        %v1000 = vpop.permute.xlu0 %999
        %v1002 = vsel %vm850, %v1000, %v997
        %1004 = vrot.lane.b32.xlu0 %v1002, 4
        %v1005 = vpop.permute.xlu0 %1004
        %v1007 = vsel %vm857, %v1005, %v1002
        %1009 = vrot.lane.b32.xlu0 %v1007, 8
        %v1010 = vpop.permute.xlu0 %1009
        %v1012 = vsel %vm865, %v1010, %v1007
        %1014 = vrot.lane.b32.xlu0 %v1012, 16
        %v1015 = vpop.permute.xlu0 %1014
        %v1017 = vsel %vm873, %v1015, %v1012
        %1019 = vrot.lane.b32.xlu0 %v1017, 32
        %v1020 = vpop.permute.xlu0 %1019
        %v1022 = vsel %vm880, %v1020, %v1017
        %1024 = vrot.lane.b32.xlu0 %v1022, 64
        %v1025 = vpop.permute.xlu0 %1024
        %v1027 = vsel %vm887, %v1025, %v1022
        %1029 = vrot.lane.b32.xlu0 %v681, 120
        %v1030 = vpop.permute.xlu0 %1029
        %1032 = vrot.lane.b32.xlu0 %v682, 120
        %v1033 = vpop.permute.xlu0 %1032
        %v1035 = vsel %vm863, %v1030, 0
        %v1038 = vsel %vm863, %v1033, 0
        %1040 = vmatprep.subr.bf16.mxu0 0
        %1041 = vmatpush1.bf16.xpose.msra.mxu0 0
        %1042 = vmatprep.subr.bf16.mxu0 0
        %1043 = vmatpush1.bf16.xpose.msra.mxu0 0
        %1044 = vmatprep.subr.bf16.mxu0 0
        %1045 = vmatpush1.bf16.xpose.msra.mxu0 0
        %1046 = vmatprep.subr.bf16.mxu0 0
        %1047 = vmatpush1.bf16.xpose.msra.mxu0 0
        %1048 = vmatprep.subr.bf16.mxu0 0
        %1049 = vmatpush1.bf16.xpose.msra.mxu0 0
        %1050 = vmatprep.subr.bf16.mxu0 0
        %1051 = vmatpush1.bf16.xpose.msra.mxu0 0
        %1052 = vmatprep.subr.bf16.mxu0 0
        %1053 = vmatpush1.bf16.xpose.msra.mxu0 0
        %1054 = vmatprep.subr.bf16.mxu0 0
        %1055 = vmatpush1.bf16.xpose.msra.mxu0 %v1038
        %1056 = vmatprep.subr.bf16.mxu0 0
        %1057 = vmatpush2.bf16.xpose.msra.mxu0 0
        %1058 = vmatprep.subr.bf16.mxu0 0
        %1059 = vmatpush2.bf16.xpose.msra.mxu0 0
        %1060 = vmatprep.subr.bf16.mxu0 0
        %1061 = vmatpush2.bf16.xpose.msra.mxu0 0
        %1062 = vmatprep.subr.bf16.mxu0 0
        %1063 = vmatpush2.bf16.xpose.msra.mxu0 0
        %1064 = vmatprep.subr.bf16.mxu0 0
        %1065 = vmatpush2.bf16.xpose.msra.mxu0 0
        %1066 = vmatprep.subr.bf16.mxu0 0
        %1067 = vmatpush2.bf16.xpose.msra.mxu0 0
        %1068 = vmatprep.subr.bf16.mxu0 0
        %1069 = vmatpush2.bf16.xpose.msra.mxu0 0
        %1070 = vmatprep.subr.bf16.mxu0 0
        %1071 = vmatpush2.bf16.xpose.msra.mxu0 0
        %1072 = vmatprep.mubr.bf16.mxu0 0
        %1073 = vmatmul.mubr.bf16.gmra.mxu0 %v1035
        %v1074 = vpop.f32.mrf.mxu0
        %v1075 = vadd.f32 %v1027, %v1074
        %v1076 = vpop.f32.mrf.mxu0
        %v1077 = vpop.f32.mrf.mxu0
        %v1078 = vpop.f32.mrf.mxu0
        %1079 = vdwg.mxu0
        %v1080 = vsel %vm863, %v1075, -inf
        %1081 = vmax.xlane.f32.xlu0 %v1080
        %v1082 = vpop.xlane.xlu0 %1081
        %v1083 = vsub.f32 %v1075, %v1082
        %v1084 = vmul.f32 %v1083, 1.442695
        %v1085 = vpow.pop %v1084
        %v1086 = vsel %vm863, %v1085, 0.0
        %1087 = vadd.xlane.f32.xlu0 %v1086
        %v1088 = vpop.xlane.xlu0 %1087
        %v1089 = vrcp.pop %v1088
        %v1090 = vmul.f32 %v1085, %v1089
        %v1091 = vpack.c.bf16 %v1090, %v1090
        %1093 = vrot.lane.b32.xlu0 %v683, 120
        %v1094 = vpop.permute.xlu0 %1093
        %v1096 = vsel %vm863, %v1091, 0
        %v1099 = vsel %vm949, %v1094, 0
        %1101 = vmatprep.subr.bf16.mxu0 0
        %1102 = vmatpush1.bf16.msra.mxu0 0
        %1103 = vmatprep.subr.bf16.mxu0 0
        %1104 = vmatpush1.bf16.msra.mxu0 0
        %1105 = vmatprep.subr.bf16.mxu0 0
        %1106 = vmatpush1.bf16.msra.mxu0 0
        %1107 = vmatprep.subr.bf16.mxu0 0
        %1108 = vmatpush1.bf16.msra.mxu0 0
        %1109 = vmatprep.subr.bf16.mxu0 0
        %1110 = vmatpush1.bf16.msra.mxu0 0
        %1111 = vmatprep.subr.bf16.mxu0 0
        %1112 = vmatpush1.bf16.msra.mxu0 0
        %1113 = vmatprep.subr.bf16.mxu0 0
        %1114 = vmatpush1.bf16.msra.mxu0 0
        %1115 = vmatprep.subr.bf16.mxu0 0
        %1116 = vmatpush1.bf16.msra.mxu0 %v1099
        %1117 = vmatprep.subr.bf16.mxu0 0
        %1118 = vmatpush2.bf16.msra.mxu0 0
        %1119 = vmatprep.subr.bf16.mxu0 0
        %1120 = vmatpush2.bf16.msra.mxu0 0
        %1121 = vmatprep.subr.bf16.mxu0 0
        %1122 = vmatpush2.bf16.msra.mxu0 0
        %1123 = vmatprep.subr.bf16.mxu0 0
        %1124 = vmatpush2.bf16.msra.mxu0 0
        %1125 = vmatprep.subr.bf16.mxu0 0
        %1126 = vmatpush2.bf16.msra.mxu0 0
        %1127 = vmatprep.subr.bf16.mxu0 0
        %1128 = vmatpush2.bf16.msra.mxu0 0
        %1129 = vmatprep.subr.bf16.mxu0 0
        %1130 = vmatpush2.bf16.msra.mxu0 0
        %1131 = vmatprep.subr.bf16.mxu0 0
        %1132 = vmatpush2.bf16.msra.mxu0 0
        %1133 = vmatprep.mubr.bf16.mxu0 0
        %1134 = vmatmul.mubr.bf16.gmra.mxu0 %v1096
        %v1135 = vpop.f32.mrf.mxu0
        %v1136 = vadd.f32 0.0, %v1135
        %v1137 = vpop.f32.mrf.mxu0
        %v1138 = vpop.f32.mrf.mxu0
        %v1139 = vpop.f32.mrf.mxu0
        %1140 = vdwg.mxu0
        %1142 = vrot.lane.b32.xlu0 %v835, 1
        %v1143 = vpop.permute.xlu0 %1142
        %v1145 = vsel %vm843, %v1143, %v835
        %1147 = vrot.lane.b32.xlu0 %v1145, 2
        %v1148 = vpop.permute.xlu0 %1147
        %v1150 = vsel %vm850, %v1148, %v1145
        %1152 = vrot.lane.b32.xlu0 %v1150, 4
        %v1153 = vpop.permute.xlu0 %1152
        %v1155 = vsel %vm857, %v1153, %v1150
        %1157 = vrot.lane.b32.xlu0 %v1155, 8
        %v1158 = vpop.permute.xlu0 %1157
        %v1160 = vsel %vm865, %v1158, %v1155
        %1162 = vrot.lane.b32.xlu0 %v1160, 16
        %v1163 = vpop.permute.xlu0 %1162
        %v1165 = vsel %vm873, %v1163, %v1160
        %1167 = vrot.lane.b32.xlu0 %v1165, 32
        %v1168 = vpop.permute.xlu0 %1167
        %v1170 = vsel %vm880, %v1168, %v1165
        %1172 = vrot.lane.b32.xlu0 %v1170, 64
        %v1173 = vpop.permute.xlu0 %1172
        %v1175 = vsel %vm887, %v1173, %v1170
        %1176 = vrot.lane.b32.xlu0 %v681, 112
        %v1177 = vpop.permute.xlu0 %1176
        %1178 = vrot.lane.b32.xlu0 %v682, 112
        %v1179 = vpop.permute.xlu0 %1178
        %v1181 = vsel %vm863, %v1177, 0
        %v1184 = vsel %vm863, %v1179, 0
        %1186 = vmatprep.subr.bf16.mxu0 0
        %1187 = vmatpush1.bf16.xpose.msra.mxu0 0
        %1188 = vmatprep.subr.bf16.mxu0 0
        %1189 = vmatpush1.bf16.xpose.msra.mxu0 0
        %1190 = vmatprep.subr.bf16.mxu0 0
        %1191 = vmatpush1.bf16.xpose.msra.mxu0 0
        %1192 = vmatprep.subr.bf16.mxu0 0
        %1193 = vmatpush1.bf16.xpose.msra.mxu0 0
        %1194 = vmatprep.subr.bf16.mxu0 0
        %1195 = vmatpush1.bf16.xpose.msra.mxu0 0
        %1196 = vmatprep.subr.bf16.mxu0 0
        %1197 = vmatpush1.bf16.xpose.msra.mxu0 0
        %1198 = vmatprep.subr.bf16.mxu0 0
        %1199 = vmatpush1.bf16.xpose.msra.mxu0 0
        %1200 = vmatprep.subr.bf16.mxu0 0
        %1201 = vmatpush1.bf16.xpose.msra.mxu0 %v1184
        %1202 = vmatprep.subr.bf16.mxu0 0
        %1203 = vmatpush2.bf16.xpose.msra.mxu0 0
        %1204 = vmatprep.subr.bf16.mxu0 0
        %1205 = vmatpush2.bf16.xpose.msra.mxu0 0
        %1206 = vmatprep.subr.bf16.mxu0 0
        %1207 = vmatpush2.bf16.xpose.msra.mxu0 0
        %1208 = vmatprep.subr.bf16.mxu0 0
        %1209 = vmatpush2.bf16.xpose.msra.mxu0 0
        %1210 = vmatprep.subr.bf16.mxu0 0
        %1211 = vmatpush2.bf16.xpose.msra.mxu0 0
        %1212 = vmatprep.subr.bf16.mxu0 0
        %1213 = vmatpush2.bf16.xpose.msra.mxu0 0
        %1214 = vmatprep.subr.bf16.mxu0 0
        %1215 = vmatpush2.bf16.xpose.msra.mxu0 0
        %1216 = vmatprep.subr.bf16.mxu0 0
        %1217 = vmatpush2.bf16.xpose.msra.mxu0 0
        %1218 = vmatprep.mubr.bf16.mxu0 0
        %1219 = vmatmul.mubr.bf16.gmra.mxu0 %v1181
        %v1220 = vpop.f32.mrf.mxu0
        %v1221 = vadd.f32 %v1175, %v1220
        %v1222 = vpop.f32.mrf.mxu0
        %v1223 = vpop.f32.mrf.mxu0
        %v1224 = vpop.f32.mrf.mxu0
        %1225 = vdwg.mxu0
        %v1226 = vsel %vm863, %v1221, -inf
        %1227 = vmax.xlane.f32.xlu0 %v1226
        %v1228 = vpop.xlane.xlu0 %1227
        %v1229 = vsub.f32 %v1221, %v1228
        %v1230 = vmul.f32 %v1229, 1.442695
        %v1231 = vpow.pop %v1230
        %v1232 = vsel %vm863, %v1231, 0.0
        %1233 = vadd.xlane.f32.xlu0 %v1232
        %v1234 = vpop.xlane.xlu0 %1233
        %v1235 = vrcp.pop %v1234
        %v1236 = vmul.f32 %v1231, %v1235
        %v1237 = vpack.c.bf16 %v1236, %v1236
        %1238 = vrot.lane.b32.xlu0 %v683, 112
        %v1239 = vpop.permute.xlu0 %1238
        %v1241 = vsel %vm863, %v1237, 0
        %v1244 = vsel %vm949, %v1239, 0
        %1246 = vmatprep.subr.bf16.mxu0 0
        %1247 = vmatpush1.bf16.msra.mxu0 0
        %1248 = vmatprep.subr.bf16.mxu0 0
        %1249 = vmatpush1.bf16.msra.mxu0 0
        %1250 = vmatprep.subr.bf16.mxu0 0
        %1251 = vmatpush1.bf16.msra.mxu0 0
        %1252 = vmatprep.subr.bf16.mxu0 0
        %1253 = vmatpush1.bf16.msra.mxu0 0
        %1254 = vmatprep.subr.bf16.mxu0 0
        %1255 = vmatpush1.bf16.msra.mxu0 0
        %1256 = vmatprep.subr.bf16.mxu0 0
        %1257 = vmatpush1.bf16.msra.mxu0 0
        %1258 = vmatprep.subr.bf16.mxu0 0
        %1259 = vmatpush1.bf16.msra.mxu0 0
        %1260 = vmatprep.subr.bf16.mxu0 0
        %1261 = vmatpush1.bf16.msra.mxu0 %v1244
        %1262 = vmatprep.subr.bf16.mxu0 0
        %1263 = vmatpush2.bf16.msra.mxu0 0
        %1264 = vmatprep.subr.bf16.mxu0 0
        %1265 = vmatpush2.bf16.msra.mxu0 0
        %1266 = vmatprep.subr.bf16.mxu0 0
        %1267 = vmatpush2.bf16.msra.mxu0 0
        %1268 = vmatprep.subr.bf16.mxu0 0
        %1269 = vmatpush2.bf16.msra.mxu0 0
        %1270 = vmatprep.subr.bf16.mxu0 0
        %1271 = vmatpush2.bf16.msra.mxu0 0
        %1272 = vmatprep.subr.bf16.mxu0 0
        %1273 = vmatpush2.bf16.msra.mxu0 0
        %1274 = vmatprep.subr.bf16.mxu0 0
        %1275 = vmatpush2.bf16.msra.mxu0 0
        %1276 = vmatprep.subr.bf16.mxu0 0
        %1277 = vmatpush2.bf16.msra.mxu0 0
        %1278 = vmatprep.mubr.bf16.mxu0 0
        %1279 = vmatmul.mubr.bf16.gmra.mxu0 %v1241
        %v1280 = vpop.f32.mrf.mxu0
        %v1281 = vadd.f32 0.0, %v1280
        %v1282 = vpop.f32.mrf.mxu0
        %v1283 = vpop.f32.mrf.mxu0
        %v1284 = vpop.f32.mrf.mxu0
        %1285 = vdwg.mxu0
        %1287 = vrot.lane.b32.xlu0 %v836, 1
        %v1288 = vpop.permute.xlu0 %1287
        %v1290 = vsel %vm843, %v1288, %v836
        %1292 = vrot.lane.b32.xlu0 %v1290, 2
        %v1293 = vpop.permute.xlu0 %1292
        %v1295 = vsel %vm850, %v1293, %v1290
        %1297 = vrot.lane.b32.xlu0 %v1295, 4
        %v1298 = vpop.permute.xlu0 %1297
        %v1300 = vsel %vm857, %v1298, %v1295
        %1302 = vrot.lane.b32.xlu0 %v1300, 8
        %v1303 = vpop.permute.xlu0 %1302
        %v1305 = vsel %vm865, %v1303, %v1300
        %1307 = vrot.lane.b32.xlu0 %v1305, 16
        %v1308 = vpop.permute.xlu0 %1307
        %v1310 = vsel %vm873, %v1308, %v1305
        %1312 = vrot.lane.b32.xlu0 %v1310, 32
        %v1313 = vpop.permute.xlu0 %1312
        %v1315 = vsel %vm880, %v1313, %v1310
        %1317 = vrot.lane.b32.xlu0 %v1315, 64
        %v1318 = vpop.permute.xlu0 %1317
        %v1320 = vsel %vm887, %v1318, %v1315
        %1321 = vrot.lane.b32.xlu0 %v681, 104
        %v1322 = vpop.permute.xlu0 %1321
        %1323 = vrot.lane.b32.xlu0 %v682, 104
        %v1324 = vpop.permute.xlu0 %1323
        %v1326 = vsel %vm863, %v1322, 0
        %v1329 = vsel %vm863, %v1324, 0
        %1331 = vmatprep.subr.bf16.mxu0 0
        %1332 = vmatpush1.bf16.xpose.msra.mxu0 0
        %1333 = vmatprep.subr.bf16.mxu0 0
        %1334 = vmatpush1.bf16.xpose.msra.mxu0 0
        %1335 = vmatprep.subr.bf16.mxu0 0
        %1336 = vmatpush1.bf16.xpose.msra.mxu0 0
        %1337 = vmatprep.subr.bf16.mxu0 0
        %1338 = vmatpush1.bf16.xpose.msra.mxu0 0
        %1339 = vmatprep.subr.bf16.mxu0 0
        %1340 = vmatpush1.bf16.xpose.msra.mxu0 0
        %1341 = vmatprep.subr.bf16.mxu0 0
        %1342 = vmatpush1.bf16.xpose.msra.mxu0 0
        %1343 = vmatprep.subr.bf16.mxu0 0
        %1344 = vmatpush1.bf16.xpose.msra.mxu0 0
        %1345 = vmatprep.subr.bf16.mxu0 0
        %1346 = vmatpush1.bf16.xpose.msra.mxu0 %v1329
        %1347 = vmatprep.subr.bf16.mxu0 0
        %1348 = vmatpush2.bf16.xpose.msra.mxu0 0
        %1349 = vmatprep.subr.bf16.mxu0 0
        %1350 = vmatpush2.bf16.xpose.msra.mxu0 0
        %1351 = vmatprep.subr.bf16.mxu0 0
        %1352 = vmatpush2.bf16.xpose.msra.mxu0 0
        %1353 = vmatprep.subr.bf16.mxu0 0
        %1354 = vmatpush2.bf16.xpose.msra.mxu0 0
        %1355 = vmatprep.subr.bf16.mxu0 0
        %1356 = vmatpush2.bf16.xpose.msra.mxu0 0
        %1357 = vmatprep.subr.bf16.mxu0 0
        %1358 = vmatpush2.bf16.xpose.msra.mxu0 0
        %1359 = vmatprep.subr.bf16.mxu0 0
        %1360 = vmatpush2.bf16.xpose.msra.mxu0 0
        %1361 = vmatprep.subr.bf16.mxu0 0
        %1362 = vmatpush2.bf16.xpose.msra.mxu0 0
        %1363 = vmatprep.mubr.bf16.mxu0 0
        %1364 = vmatmul.mubr.bf16.gmra.mxu0 %v1326
        %v1365 = vpop.f32.mrf.mxu0
        %v1366 = vadd.f32 %v1320, %v1365
        %v1367 = vpop.f32.mrf.mxu0
        %v1368 = vpop.f32.mrf.mxu0
        %v1369 = vpop.f32.mrf.mxu0
        %1370 = vdwg.mxu0
        %v1371 = vsel %vm863, %v1366, -inf
        %1372 = vmax.xlane.f32.xlu0 %v1371
        %v1373 = vpop.xlane.xlu0 %1372
        %v1374 = vsub.f32 %v1366, %v1373
        %v1375 = vmul.f32 %v1374, 1.442695
        %v1376 = vpow.pop %v1375
        %v1377 = vsel %vm863, %v1376, 0.0
        %1378 = vadd.xlane.f32.xlu0 %v1377
        %v1379 = vpop.xlane.xlu0 %1378
        %v1380 = vrcp.pop %v1379
        %v1381 = vmul.f32 %v1376, %v1380
        %v1382 = vpack.c.bf16 %v1381, %v1381
        %1383 = vrot.lane.b32.xlu0 %v683, 104
        %v1384 = vpop.permute.xlu0 %1383
        %v1386 = vsel %vm863, %v1382, 0
        %v1389 = vsel %vm949, %v1384, 0
        %1391 = vmatprep.subr.bf16.mxu0 0
        %1392 = vmatpush1.bf16.msra.mxu0 0
        %1393 = vmatprep.subr.bf16.mxu0 0
        %1394 = vmatpush1.bf16.msra.mxu0 0
        %1395 = vmatprep.subr.bf16.mxu0 0
        %1396 = vmatpush1.bf16.msra.mxu0 0
        %1397 = vmatprep.subr.bf16.mxu0 0
        %1398 = vmatpush1.bf16.msra.mxu0 0
        %1399 = vmatprep.subr.bf16.mxu0 0
        %1400 = vmatpush1.bf16.msra.mxu0 0
        %1401 = vmatprep.subr.bf16.mxu0 0
        %1402 = vmatpush1.bf16.msra.mxu0 0
        %1403 = vmatprep.subr.bf16.mxu0 0
        %1404 = vmatpush1.bf16.msra.mxu0 0
        %1405 = vmatprep.subr.bf16.mxu0 0
        %1406 = vmatpush1.bf16.msra.mxu0 %v1389
        %1407 = vmatprep.subr.bf16.mxu0 0
        %1408 = vmatpush2.bf16.msra.mxu0 0
        %1409 = vmatprep.subr.bf16.mxu0 0
        %1410 = vmatpush2.bf16.msra.mxu0 0
        %1411 = vmatprep.subr.bf16.mxu0 0
        %1412 = vmatpush2.bf16.msra.mxu0 0
        %1413 = vmatprep.subr.bf16.mxu0 0
        %1414 = vmatpush2.bf16.msra.mxu0 0
        %1415 = vmatprep.subr.bf16.mxu0 0
        %1416 = vmatpush2.bf16.msra.mxu0 0
        %1417 = vmatprep.subr.bf16.mxu0 0
        %1418 = vmatpush2.bf16.msra.mxu0 0
        %1419 = vmatprep.subr.bf16.mxu0 0
        %1420 = vmatpush2.bf16.msra.mxu0 0
        %1421 = vmatprep.subr.bf16.mxu0 0
        %1422 = vmatpush2.bf16.msra.mxu0 0
        %1423 = vmatprep.mubr.bf16.mxu0 0
        %1424 = vmatmul.mubr.bf16.gmra.mxu0 %v1386
        %v1425 = vpop.f32.mrf.mxu0
        %v1426 = vadd.f32 0.0, %v1425
        %v1427 = vpop.f32.mrf.mxu0
        %v1428 = vpop.f32.mrf.mxu0
        %v1429 = vpop.f32.mrf.mxu0
        %1430 = vdwg.mxu0
        %1432 = vrot.lane.b32.xlu0 %v1136, 8
        %v1433 = vpop.permute.xlu0 %1432
        %1436 = vrot.lane.b32.xlu0 %v1281, 16
        %v1437 = vpop.permute.xlu0 %1436
        %1440 = vrot.lane.b32.xlu0 %v1426, 24
        %v1441 = vpop.permute.xlu0 %1440
        %v1443 = vsel %vm863, %v988, %v1433
        %v1444 = vsel %vm871, %v1443, %v1437
        %vm1445 = vcmask 195584
        %v1446 = vsel %vm1445, %v1444, %v1441
        %v1447 = vpack.c.bf16 %v1446, %v1446
        %v1448 = vld [vmem:[#allocation11] sm:$0xf]
        %v1449 = vld [vmem:[#allocation11 + $0x4] sm:$0xf]
        %v1450 = vld [vmem:[#allocation11 + $0x8] sm:$0xf]
        %v1451 = vld [vmem:[#allocation11 + $0xc] sm:$0xf]
        %v1452 = vld [vmem:[%s7] sm:$0x1]
        %v1454 = vlaneseq
        %v1455 = vshrl.u32 %v1454, 7
        %v1456 = vsub.s32 0, %v1455
        %v1457 = vrot.slane %v1452, %v1456
        %v1463 = vunpack.c.l.b16 %v1448
        %v1464 = vunpack.c.l.b16 %v1449
        %v1465 = vunpack.c.l.b16 %v1450
        %v1466 = vunpack.c.l.b16 %v1451
        %v1467 = vpack.c.b16 %v1464, %v1463
        %v1468 = vpack.c.b16 %v1466, %v1465
        %v1472 = vsel %vm510, %v1447, 0
        %1474 = vmatprep.subr.bf16.mxu0 0
        %1475 = vmatpush1.bf16.msra.mxu0 0
        %1476 = vmatprep.subr.bf16.mxu0 0
        %1477 = vmatpush1.bf16.msra.mxu0 0
        %1478 = vmatprep.subr.bf16.mxu0 0
        %1479 = vmatpush1.bf16.msra.mxu0 0
        %1480 = vmatprep.subr.bf16.mxu0 0
        %1481 = vmatpush1.bf16.msra.mxu0 0
        %1482 = vmatprep.subr.bf16.mxu0 0
        %1483 = vmatpush1.bf16.msra.mxu0 0
        %1484 = vmatprep.subr.bf16.mxu0 0
        %1485 = vmatpush1.bf16.msra.mxu0 0
        %1486 = vmatprep.subr.bf16.mxu0 0
        %1487 = vmatpush1.bf16.msra.mxu0 %v1468
        %1488 = vmatprep.subr.bf16.mxu0 0
        %1489 = vmatpush1.bf16.msra.mxu0 %v1467
        %1490 = vmatprep.subr.bf16.mxu0 0
        %1491 = vmatpush2.bf16.msra.mxu0 0
        %1492 = vmatprep.subr.bf16.mxu0 0
        %1493 = vmatpush2.bf16.msra.mxu0 0
        %1494 = vmatprep.subr.bf16.mxu0 0
        %1495 = vmatpush2.bf16.msra.mxu0 0
        %1496 = vmatprep.subr.bf16.mxu0 0
        %1497 = vmatpush2.bf16.msra.mxu0 0
        %1498 = vmatprep.subr.bf16.mxu0 0
        %1499 = vmatpush2.bf16.msra.mxu0 0
        %1500 = vmatprep.subr.bf16.mxu0 0
        %1501 = vmatpush2.bf16.msra.mxu0 0
        %1502 = vmatprep.subr.bf16.mxu0 0
        %1503 = vmatpush2.bf16.msra.mxu0 0
        %1504 = vmatprep.subr.bf16.mxu0 0
        %1505 = vmatpush2.bf16.msra.mxu0 0
        %1506 = vmatprep.mubr.bf16.mxu0 0
        %1507 = vmatmul.mubr.bf16.gmra.mxu0 %v1472
        %v1508 = vpop.f32.mrf.mxu0
        %v1509 = vadd.f32 %v1457, %v1508
        %v1510 = vpop.f32.mrf.mxu0
        %v1511 = vpop.f32.mrf.mxu0
        %v1512 = vpop.f32.mrf.mxu0
        %1513 = vdwg.mxu0
        %1514 = vst.msk [vmem:[%s466] sm:$0xff] %vm510, %v1509
        %1515 = vst.msk [vmem:[%s473] sm:$0xff] %vm863, %v944
        %1516 = vst.msk [vmem:[%s473 + $0x8] sm:$0xff] %vm863, %v1090
        %1517 = vst.msk [vmem:[%s473 + $0x10] sm:$0xff] %vm863, %v1236
        %1518 = vst.msk [vmem:[%s473 + $0x18] sm:$0xff] %vm863, %v1381
        %s1519 = sand.u32 %s226, 1
        %s1520 = scalar_lea.sflag [#allocation4], %s1519
        %s1521 = sand.u32 %s226, 1
        %s1522 = smul.addr %s1521, 8
        %s1523 = scalar_lea.vmem [#allocation13], %s1522
        %s1524 = sand.u32 %s252, 1
        %s1525 = scalar_lea.sflag [#allocation15], %s1524
        %s1526 = sand.u32 %s252, 1
        %s1527 = smul.addr %s1526, 32
        %s1528 = scalar_lea.vmem [#allocation14], %s1527
        // Predicated region
        $region77: #{tpu_custom_call.1} parent=51 // pred_check
          %p1529 = pneg %p236
        $region78: #{tpu_custom_call.1} parent=51 // pred_check_branch
          %1531 = sbr.rel (%p1529) target = $region80
        $region79: #{tpu_custom_call.1} parent=51 // pred_region
          %s1533 = ssub.s32 128, 128
          %1534 = vsyncadd %s1520, %s1533
          %s1535 = smul.addr %s35, 128
          %s1536 = scalar_lea.hbm %s8, %s1535
          %s1538 = sshll.u32 %s1523, 4
          %s1539 = int_to_ptr.vmem [resolvable:$true] %s1538
          %1541 = dma.vmem_to_hbm [thread:$0]  %s1539, 128, %s1536, %s1520
        $region80: #{tpu_custom_call.1} parent=51 // pred_fallthru
          _
        // Predicated region
        $region81: #{tpu_custom_call.1} parent=51 // pred_check
          %p1542 = pneg %p262
        $region82: #{tpu_custom_call.1} parent=51 // pred_check_branch
          %1544 = sbr.rel (%p1542) target = $region84
        $region83: #{tpu_custom_call.1} parent=51 // pred_region
          %s1546 = ssub.s32 512, 512
          %1547 = vsyncadd %s1525, %s1546
          %s1548 = smul.addr %s35, 4
          %s1549 = smul.addr %s1548, 128
          %s1550 = scalar_lea.hbm %s9, %s1549
          %s1551 = sshll.u32 %s1528, 4
          %s1552 = int_to_ptr.vmem [resolvable:$true] %s1551
          %1557 = dma.vmem_to_hbm [thread:$0]  %s1552, 512, %s1550, %s1525, 128, 128, 8
        $region84: #{tpu_custom_call.1} parent=51 // pred_fallthru
          _
      $region52: #{tpu_custom_call.1} parent=5 // pred_fallthru
        _
      %p1558 = scmp.le.s32.totalorder 2, %s30
      // Predicated region
      $region85: #{tpu_custom_call.1} parent=5 // pred_check
        %p1559 = pneg %p1558
      $region86: #{tpu_custom_call.1} parent=5 // pred_check_branch
        %1561 = sbr.rel (%p1559) target = $region88
      $region87: #{tpu_custom_call.1} parent=5 // pred_region
        %s1562 = ssub.s32 %s30, 2
        // Predicated region
        $region89: #{tpu_custom_call.1} parent=87 // pred_check
          %p1563 = pneg %p242
        $region90: #{tpu_custom_call.1} parent=87 // pred_check_branch
          %1565 = sbr.rel (%p1563) target = $region92
        $region91: #{tpu_custom_call.1} parent=87 // pred_region
          %s1566 = sand.u32 %s227, 1
          %s1567 = scalar_lea.sflag [#allocation4], %s1566
          %s1568 = sand.u32 %s227, 1
          %s1569 = smul.addr %s1568, 8
          %s1570 = scalar_lea.vmem [#allocation13], %s1569
          %1571 = dma.done %s1567, 128
        $region92: #{tpu_custom_call.1} parent=87 // pred_fallthru
          _
        // Predicated region
        $region93: #{tpu_custom_call.1} parent=87 // pred_check
          %p1572 = pneg %p268
        $region94: #{tpu_custom_call.1} parent=87 // pred_check_branch
          %1574 = sbr.rel (%p1572) target = $region96
        $region95: #{tpu_custom_call.1} parent=87 // pred_region
          %s1575 = sand.u32 %s253, 1
          %s1576 = scalar_lea.sflag [#allocation15], %s1575
          %s1577 = sand.u32 %s253, 1
          %s1578 = smul.addr %s1577, 32
          %s1579 = scalar_lea.vmem [#allocation14], %s1578
          %1580 = dma.done %s1576, 512
        $region96: #{tpu_custom_call.1} parent=87 // pred_fallthru
          _
      $region88: #{tpu_custom_call.1} parent=5 // pred_fallthru
        _
    $region6: #{tpu_custom_call.1} parent=1 // loop_footer
      %s34 = sadd.s32 1, %s30
    $region7: #{tpu_custom_call.1} parent=1 // loop_footer_branch
      %29 = sbr.rel target = $region3
    $region8: #{tpu_custom_call.1} parent=1 // loop_exit
      _
    %1581 = vsyncpa [#allocation3], 1
    %s1582 = scalar_lea.sflag [#allocation3], 1
    %1583 = vsyncpa %s1582, 1
    %1584 = vsyncpa [#allocation6], 1
    %s1585 = scalar_lea.sflag [#allocation6], 1
    %1586 = vsyncpa %s1585, 1
    %1587 = vsyncpa [#allocation9], 1
    %1588 = vsyncpa [#allocation12], 1
    %1589 = vsyncpa [#allocation4], 1
    %s1590 = scalar_lea.sflag [#allocation4], 1
    %1591 = vsyncpa %s1590, 1
    %1592 = vsyncpa [#allocation15], 1
    %s1593 = scalar_lea.sflag [#allocation15], 1
    %1594 = vsyncpa %s1593, 1

</llo_original>
